<compile_context>
chip_gen: v7x
topology: tpu7x:2x2x1
jax: 0.10.0
libtpu: 0.0.40
codegen_flags: <defaults>
</compile_context>

<pallas_src>
import jax
import jax.numpy as jnp
from jax.experimental import pallas as pl
from jax.experimental.pallas import tpu as pltpu


_MID = 128    # FC hidden width padded (100 -> 128)
_OUTP = 64    # FC output width padded (2 -> 64); two orderings packed -> 128


# ----------------------------------------------------------------------------
# Single fused kernel (grid over time blocks, "arbitrary" = serial):
#   1. Batched input projection for BOTH streams -> VMEM scratch (off the
#      serial critical path, Tc*Npad rows per MXU pass).
#   2. Serial h/c recurrence over the correct stream only; per step one
#      [Npad,H]@[H,4H] matmul + gate math; a full-width 4H(=128)-lane history
#      slab [h_t | h_{t-1} | c_{t-1} | c_t] is written to VMEM scratch.
#   3. Batched "wrong" branch for the whole block (it never updates state)
#      + fused FC head; compact lane-dense 128-wide logits slab written out.
# ----------------------------------------------------------------------------
def _fused_lstm_fc_kernel(xc_ref, xw_ref, wih_ref, bias_ref, whh_ref,
                          w1_ref, b1_ref, w2_ref, b2_ref, y_ref,
                          h_sc, c_sc, prec_sc, prew_sc, hist_sc):
    Tc, Np, Dinp = xc_ref.shape
    H = h_sc.shape[-1]
    R = Tc * Np

    @pl.when(pl.program_id(0) == 0)
    def _():
        h_sc[...] = jnp.zeros_like(h_sc)
        c_sc[...] = jnp.zeros_like(c_sc)

    # ---- 1. Batched pre-gates for both streams (bias folded in). ------------
    wih = wih_ref[...]                                   # bf16 [Dinp, 4H]
    bias = bias_ref[...]                                 # f32  [1, 4H]
    prec_sc[...] = jnp.dot(xc_ref[...].reshape(R, Dinp), wih,
                           preferred_element_type=jnp.float32) + bias
    prew_sc[...] = jnp.dot(xw_ref[...].reshape(R, Dinp), wih,
                           preferred_element_type=jnp.float32) + bias

    whh = whh_ref[...]                                   # bf16 [H, 4H]

    def gate_math(gates, c_prev):
        sio = jax.nn.sigmoid(gates[:, :3 * H])           # [i|f|o] contiguous
        i = sio[:, 0:H]
        f = sio[:, H:2 * H]
        o = sio[:, 2 * H:3 * H]
        g = jnp.tanh(gates[:, 3 * H:])
        c_new = f * c_prev + i * g
        h_new = o * jnp.tanh(c_new)
        return h_new, c_new

    # ---- 2. Minimal serial recurrence (correct stream only). ----------------
    def step(k, carry):
        h_prev = h_sc[...]
        c_prev = c_sc[...]
        r0 = pl.multiple_of(k * Np, Np)
        hh = jnp.dot(h_prev.astype(jnp.bfloat16), whh,
                     preferred_element_type=jnp.float32)
        gates = prec_sc[pl.ds(r0, Np), :] + hh
        h_new, c_new = gate_math(gates, c_prev)
        # Full-width 128-lane history store: [h_t | h_{t-1} | c_{t-1} | c_t].
        # (trailing c_t is unused downstream; it keeps the store full-vreg.)
        hist_sc[pl.ds(r0, Np), :] = jnp.concatenate(
            [h_new, h_prev, c_prev, c_new], axis=-1)
        h_sc[...] = h_new
        c_sc[...] = c_new
        return carry

    jax.lax.fori_loop(0, Tc, step, 0, unroll=min(Tc, 8))

    # ---- 3. Batched "wrong" branch + fused FC head for the whole block. -----
    hist = hist_sc[...]                                  # f32 [R, 4H]
    h_c = hist[:, 0:H]                                   # correct h_t
    h_p = hist[:, H:2 * H]                               # h_{t-1}
    c_p = hist[:, 2 * H:3 * H]                           # c_{t-1}
    hh_w = jnp.dot(h_p.astype(jnp.bfloat16), whh,
                   preferred_element_type=jnp.float32)
    gates_w = prew_sc[...] + hh_w
    h_w, _ = gate_math(gates_w, c_p)                     # wrong h_t

    rows = jnp.concatenate(
        [jnp.concatenate([h_c, h_w], axis=-1),           # eng0 = [correct|wrong]
         jnp.concatenate([h_w, h_c], axis=-1)],          # eng1 = [wrong|correct]
        axis=0)                                          # [2R, 2H]
    mid = jnp.dot(rows.astype(jnp.bfloat16), w1_ref[...],
                  preferred_element_type=jnp.float32) + b1_ref[...]
    mid = jnp.maximum(mid, 0.0)
    out = jnp.dot(mid.astype(jnp.bfloat16), w2_ref[...],
                  preferred_element_type=jnp.float32) + b2_ref[...]   # [2R, 64]
    # Compact lane-dense output slab: [eng0 logits (64) | eng1 logits (64)].
    y_ref[...] = jnp.concatenate([out[:R, :], out[R:, :]],
                                 axis=-1).reshape(Tc, Np, 2 * _OUTP)


# ----------------------------------------------------------------------------
# Weight preparation: gate reorder [i,f,g,o] -> [i,f,o,g], bias fold, Din row
# padding of Wih to a lane-dense 128, bf16 cast of MXU operands, zero-padded
# FC head (hidden -> 128, output -> 64).
# ----------------------------------------------------------------------------
def _prep_weights(params, Dinp):
    H = params["Whh"].shape[0]
    Din = params["Wih"].shape[0]
    perm = jnp.concatenate([jnp.arange(0, 2 * H),
                            jnp.arange(3 * H, 4 * H),
                            jnp.arange(2 * H, 3 * H)])
    wih = jnp.zeros((Dinp, 4 * H), jnp.float32).at[:Din].set(params["Wih"][:, perm])
    whh = params["Whh"][:, perm]
    bias = (params["bih"] + params["bhh"])[:, perm].astype(jnp.float32)

    W1, b1, W2, b2 = params["W1"], params["b1"], params["W2"], params["b2"]
    W1p = jnp.zeros((W1.shape[0], _MID), jnp.float32).at[:, :W1.shape[1]].set(W1)
    b1p = jnp.zeros((1, _MID), jnp.float32).at[:, :b1.shape[1]].set(b1)
    W2p = jnp.zeros((_MID, _OUTP), jnp.float32).at[:W2.shape[0], :W2.shape[1]].set(W2)
    b2p = jnp.zeros((1, _OUTP), jnp.float32).at[:, :b2.shape[1]].set(b2)
    return (wih.astype(jnp.bfloat16), whh.astype(jnp.bfloat16), bias,
            W1p.astype(jnp.bfloat16), b1p, W2p.astype(jnp.bfloat16), b2p)


def lstm_fc_forward(features, skipped, params, *, T):
    """features/skipped: [T, N, Din] (seq-major). Returns predictions [T, 2N, 2]."""
    N, Din = features.shape[1], features.shape[2]
    H = params["Whh"].shape[0]
    assert (4 * H) % 128 == 0, "lstm_units must be a multiple of 32 (lane-dense gates)"

    Npad = max(8, ((N + 7) // 8) * 8)            # sublane-dense batch
    Dinp = ((Din + 127) // 128) * 128            # lane-dense feature width
    Tc = max(1, min(T, 32))                      # timesteps per grid step
    Tpad = ((T + Tc - 1) // Tc) * Tc
    G = Tpad // Tc

    wih, whh, bias, W1p, b1p, W2p, b2p = _prep_weights(params, Dinp)

    def _pad(x):
        return jnp.pad(x, ((0, Tpad - T), (0, Npad - N),
                           (0, Dinp - Din))).astype(jnp.bfloat16)

    xc = _pad(features)                          # bf16 [Tpad, Npad, Dinp]
    xw = _pad(skipped)

    y = pl.pallas_call(
        _fused_lstm_fc_kernel,
        out_shape=jax.ShapeDtypeStruct((Tpad, Npad, 2 * _OUTP), jnp.float32),
        grid_spec=pltpu.PrefetchScalarGridSpec(
            num_scalar_prefetch=0,
            grid=(G,),
            in_specs=[
                pl.BlockSpec((Tc, Npad, Dinp), lambda i: (i, 0, 0)),   # features
                pl.BlockSpec((Tc, Npad, Dinp), lambda i: (i, 0, 0)),   # skipped
                pl.BlockSpec((Dinp, 4 * H), lambda i: (0, 0)),         # Wih
                pl.BlockSpec((1, 4 * H), lambda i: (0, 0)),            # bias
                pl.BlockSpec((H, 4 * H), lambda i: (0, 0)),            # Whh
                pl.BlockSpec((2 * H, _MID), lambda i: (0, 0)),         # W1
                pl.BlockSpec((1, _MID), lambda i: (0, 0)),             # b1
                pl.BlockSpec((_MID, _OUTP), lambda i: (0, 0)),         # W2
                pl.BlockSpec((1, _OUTP), lambda i: (0, 0)),            # b2
            ],
            out_specs=pl.BlockSpec((Tc, Npad, 2 * _OUTP), lambda i: (i, 0, 0)),
            scratch_shapes=[
                pltpu.VMEM((Npad, H), jnp.float32),             # h carry
                pltpu.VMEM((Npad, H), jnp.float32),             # c carry
                pltpu.VMEM((Tc * Npad, 4 * H), jnp.float32),    # pre-gates (correct)
                pltpu.VMEM((Tc * Npad, 4 * H), jnp.float32),    # pre-gates (skipped)
                pltpu.VMEM((Tc * Npad, 4 * H), jnp.float32),    # per-step history
            ],
        ),
        compiler_params=pltpu.CompilerParams(
            dimension_semantics=("arbitrary",),
            vmem_limit_bytes=32 * 1024 * 1024,
        ),
    )(xc, xw, wih, bias, whh, W1p, b1p, W2p, b2p)

    # Unpack the compact logits: lanes [0:2] = [correct|wrong] ordering rows,
    # lanes [_OUTP:_OUTP+2] = [wrong|correct] ordering rows; interleave exactly
    # like the torch view(T*2*N, -1), then strip padding.
    y = y[:T, :N]                                                     # [T, N, 128]
    preds = jnp.stack([y[..., 0:2], y[..., _OUTP:_OUTP + 2]], axis=2)  # [T, N, 2, 2]
    return preds.reshape(T, 2 * N, 2)


# ----------------------------------------------------------------------------
# Full forward (feature-extraction stub in plain JAX + Pallas hot path).
# ----------------------------------------------------------------------------
def frame_correlation_predict(frames, params):
    """frames: [F, N, C, H, W] -> (predictions [T, 2N, 2], labels [T, 2N])."""
    F_, N, C, Hi, Wi = frames.shape
    T = F_ - 2

    # TODO(synk): resnet50 backbone + CorrNet + next_two_feature_extraction are
    # external pretrained modules; replaced with a deterministic projection stub.
    flat = frames.reshape(F_, N, C * Hi * Wi)
    xfeat = jnp.tanh(flat @ params["Wb"])                               # [F, N, Db]
    corr_next = jnp.tanh((xfeat * jnp.roll(xfeat, -1, axis=0)) @ params["Wc"])
    corr_skip = jnp.tanh((xfeat * jnp.roll(xfeat, -2, axis=0)) @ params["Wc"])
    features = jnp.concatenate([corr_next, xfeat], axis=-1)             # [F, N, Din]
    skipped = jnp.concatenate([corr_skip, xfeat], axis=-1)              # [F, N, Din]

    preds = lstm_fc_forward(features[:T], skipped[:T], params, T=T)
    labels = jnp.tile(jnp.array([1, 0], dtype=jnp.int32),
                      (T, N, 1)).reshape(T, N * 2)
    return preds, labels


# ----------------------------------------------------------------------------
# Pure-JAX f32 reference for the LSTM + FC path (torch [i,f,g,o] gate layout).
# ----------------------------------------------------------------------------
def _reference_lstm_fc(features, skipped, params, T):
    H = params["Whh"].shape[0]
    N = features.shape[1]
    h = jnp.zeros((N, H), jnp.float32)
    c = jnp.zeros((N, H), jnp.float32)

    def cell(x, h, c):
        g = x @ params["Wih"] + h @ params["Whh"] + params["bih"][0] + params["bhh"][0]
        i = jax.nn.sigmoid(g[:, :H])
        f = jax.nn.sigmoid(g[:, H:2 * H])
        gg = jnp.tanh(g[:, 2 * H:3 * H])
        o = jax.nn.sigmoid(g[:, 3 * H:])
        c2 = f * c + i * gg
        return o * jnp.tanh(c2), c2

    cs, ws = [], []
    for t in range(T):
        hw, _ = cell(skipped[t], h, c)
        h, c = cell(features[t], h, c)
        ws.append(hw)
        cs.append(h)
    correct = jnp.stack(cs)
    wrong = jnp.stack(ws)
    eng0 = jnp.concatenate([correct, wrong], axis=-1)
    eng1 = jnp.concatenate([wrong, correct], axis=-1)
    fc_in = jnp.concatenate([eng0, eng1], axis=-1).reshape(T * 2 * N, 2 * H)
    hmid = jnp.maximum(fc_in @ params["W1"] + params["b1"][0], 0.0)
    return (hmid @ params["W2"] + params["b2"][0]).reshape(T, 2 * N, 2)


def make_params(key, *, C, Hi, Wi, backbone_dim, corr_dim, lstm_units):
    ks = jax.random.split(key, 10)
    input_dim = backbone_dim + corr_dim
    H = lstm_units
    k_lstm = 1.0 / jnp.sqrt(H)
    k_fc1 = 1.0 / jnp.sqrt(2.0 * H)
    k_fc2 = 1.0 / jnp.sqrt(100.0)
    u = lambda k, shape, b: jax.random.uniform(k, shape, jnp.float32, -b, b)
    return dict(
        Wb=u(ks[0], (C * Hi * Wi, backbone_dim), 0.05),
        Wc=u(ks[1], (backbone_dim, corr_dim), 0.2),
        Wih=u(ks[2], (input_dim, 4 * H), k_lstm),
        Whh=u(ks[3], (H, 4 * H), k_lstm),
        bih=u(ks[4], (1, 4 * H), k_lstm),
        bhh=u(ks[5], (1, 4 * H), k_lstm),
        W1=u(ks[6], (2 * H, 100), k_fc1),
        b1=u(ks[7], (1, 100), k_fc1),
        W2=u(ks[8], (100, 2), k_fc2),
        b2=u(ks[9], (1, 2), k_fc2),
    )


if __name__ == "__main__":
    # Small shapes consistent with the module: frames [F, N, C, H, W].
    F, N, C, Hi, Wi = 8, 2, 4, 16, 16
    backbone_dim, corr_dim, lstm_units = 64, 32, 32
    T = F - 2

    key = jax.random.PRNGKey(0)
    kf, kp = jax.random.split(key)
    frames = jax.random.normal(kf, (F, N, C, Hi, Wi), jnp.float32)
    params = make_params(kp, C=C, Hi=Hi, Wi=Wi, backbone_dim=backbone_dim,
                         corr_dim=corr_dim, lstm_units=lstm_units)

    fwd = jax.jit(frame_correlation_predict)
    preds, labels = jax.block_until_ready(fwd(frames, params))

    assert preds.shape == (T, 2 * N, 2)
    assert labels.shape == (T, 2 * N)

    # Verify the Pallas LSTM + FC path against a pure-JAX f32 reference.
    # (Pallas path uses bf16 MXU operands with f32 accumulation.)
    flat = frames.reshape(F, N, C * Hi * Wi)
    xfeat = jnp.tanh(flat @ params["Wb"])
    feats = jnp.concatenate(
        [jnp.tanh((xfeat * jnp.roll(xfeat, -1, axis=0)) @ params["Wc"]), xfeat], -1)
    skips = jnp.concatenate(
        [jnp.tanh((xfeat * jnp.roll(xfeat, -2, axis=0)) @ params["Wc"]), xfeat], -1)
    ref = _reference_lstm_fc(feats, skips, params, T)
    err = jnp.max(jnp.abs(preds - ref))
    assert jnp.allclose(preds, ref, atol=2e-2, rtol=2e-2), f"mismatch vs reference: {err}"

    print("KERNEL_OK")
</pallas_src>

<mosaic_0001>
module attributes {stable_mosaic.version = 11 : i64} {
  func.func @_fused_lstm_fc_kernel(%arg0: i32, %arg1: memref<6x8x128xbf16, #tpu.memory_space<vmem>>, %arg2: memref<6x8x128xbf16, #tpu.memory_space<vmem>>, %arg3: memref<128x128xbf16, #tpu.memory_space<vmem>>, %arg4: memref<1x128xf32, #tpu.memory_space<vmem>>, %arg5: memref<32x128xbf16, #tpu.memory_space<vmem>>, %arg6: memref<64x128xbf16, #tpu.memory_space<vmem>>, %arg7: memref<1x128xf32, #tpu.memory_space<vmem>>, %arg8: memref<128x64xbf16, #tpu.memory_space<vmem>>, %arg9: memref<1x64xf32, #tpu.memory_space<vmem>>, %arg10: memref<6x8x128xf32, #tpu.memory_space<vmem>>, %arg11: memref<8x32xf32, #tpu.memory_space<vmem>>, %arg12: memref<8x32xf32, #tpu.memory_space<vmem>>, %arg13: memref<48x128xf32, #tpu.memory_space<vmem>>, %arg14: memref<48x128xf32, #tpu.memory_space<vmem>>, %arg15: memref<48x128xf32, #tpu.memory_space<vmem>>) attributes {dimension_semantics = [#tpu.dimension_semantics<arbitrary>], iteration_bounds = array<i64: 1>, scalar_prefetch = 0 : i64, scratch_operands = 5 : i64, tpu.core_type = #tpu.core_type<tc>, window_params = [{transform_indices = @transform_0, window_bounds = array<i64: 6, 8, 128>}, {transform_indices = @transform_1, window_bounds = array<i64: 6, 8, 128>}, {pipeline_mode = #tpu.pipeline_mode<synchronous>, transform_indices = @transform_2, window_bounds = array<i64: 128, 128>}, {pipeline_mode = #tpu.pipeline_mode<synchronous>, transform_indices = @transform_3, window_bounds = array<i64: 1, 128>}, {pipeline_mode = #tpu.pipeline_mode<synchronous>, transform_indices = @transform_4, window_bounds = array<i64: 32, 128>}, {pipeline_mode = #tpu.pipeline_mode<synchronous>, transform_indices = @transform_5, window_bounds = array<i64: 64, 128>}, {pipeline_mode = #tpu.pipeline_mode<synchronous>, transform_indices = @transform_6, window_bounds = array<i64: 1, 128>}, {pipeline_mode = #tpu.pipeline_mode<synchronous>, transform_indices = @transform_7, window_bounds = array<i64: 128, 64>}, {pipeline_mode = #tpu.pipeline_mode<synchronous>, transform_indices = @transform_8, window_bounds = array<i64: 1, 64>}, {transform_indices = @transform_9, window_bounds = array<i64: 6, 8, 128>}]} {
    %c0_i32 = arith.constant 0 : i32
    %0 = arith.cmpi eq, %arg0, %c0_i32 : i32
    %1 = arith.extui %0 : i1 to i32
    %c0_i32_0 = arith.constant 0 : i32
    %2 = arith.cmpi ne, %1, %c0_i32_0 : i32
    scf.if %2 {
      %cst_115 = arith.constant 0.000000e+00 : f32
      %244 = vector.broadcast %cst_115 : f32 to vector<8x32xf32>
      %c0_116 = arith.constant 0 : index
      %c0_117 = arith.constant 0 : index
      %245 = vector.load %arg11[%c0_116, %c0_117] : memref<8x32xf32, #tpu.memory_space<vmem>>, vector<8x32xf32>
      tpu.vector_store %arg11[%c0_116, %c0_117], %244 {strides = array<i32>} : memref<8x32xf32, #tpu.memory_space<vmem>>, vector<8x32xf32>,
      %cst_118 = arith.constant 0.000000e+00 : f32
      %246 = vector.broadcast %cst_118 : f32 to vector<8x32xf32>
      %c0_119 = arith.constant 0 : index
      %c0_120 = arith.constant 0 : index
      %247 = vector.load %arg12[%c0_119, %c0_120] : memref<8x32xf32, #tpu.memory_space<vmem>>, vector<8x32xf32>
      tpu.vector_store %arg12[%c0_119, %c0_120], %246 {strides = array<i32>} : memref<8x32xf32, #tpu.memory_space<vmem>>, vector<8x32xf32>,
    } else {
    }
    %c0 = arith.constant 0 : index
    %c0_1 = arith.constant 0 : index
    %3 = vector.load %arg3[%c0, %c0_1] : memref<128x128xbf16, #tpu.memory_space<vmem>>, vector<128x128xbf16>
    %c0_2 = arith.constant 0 : index
    %c0_3 = arith.constant 0 : index
    %4 = vector.load %arg4[%c0_2, %c0_3] : memref<1x128xf32, #tpu.memory_space<vmem>>, vector<1x128xf32>
    %c0_4 = arith.constant 0 : index
    %c0_5 = arith.constant 0 : index
    %c0_6 = arith.constant 0 : index
    %5 = vector.load %arg1[%c0_4, %c0_5, %c0_6] : memref<6x8x128xbf16, #tpu.memory_space<vmem>>, vector<6x8x128xbf16>
    %6 = vector.shape_cast %5 : vector<6x8x128xbf16> to vector<48x128xbf16>
    %cst = arith.constant dense<0.000000e+00> : vector<48x128xf32>
    %7 = tpu.matmul %6, %3, %cst {dimension_numbers = #tpu.dot_dimension_numbers<[1], [0], [0], [1], [0, 0, 1, 1], [], []>} : vector<48x128xbf16>, vector<128x128xbf16>, vector<48x128xf32> -> vector<48x128xf32>
    %8 = vector.broadcast %4 : vector<1x128xf32> to vector<48x128xf32>
    %9 = arith.addf %7, %8 : vector<48x128xf32>
    %c0_7 = arith.constant 0 : index
    %c0_8 = arith.constant 0 : index
    %10 = vector.load %arg13[%c0_7, %c0_8] : memref<48x128xf32, #tpu.memory_space<vmem>>, vector<48x128xf32>
    tpu.vector_store %arg13[%c0_7, %c0_8], %9 {strides = array<i32>} : memref<48x128xf32, #tpu.memory_space<vmem>>, vector<48x128xf32>,
    %c0_9 = arith.constant 0 : index
    %c0_10 = arith.constant 0 : index
    %c0_11 = arith.constant 0 : index
    %11 = vector.load %arg2[%c0_9, %c0_10, %c0_11] : memref<6x8x128xbf16, #tpu.memory_space<vmem>>, vector<6x8x128xbf16>
    %12 = vector.shape_cast %11 : vector<6x8x128xbf16> to vector<48x128xbf16>
    %cst_12 = arith.constant dense<0.000000e+00> : vector<48x128xf32>
    %13 = tpu.matmul %12, %3, %cst_12 {dimension_numbers = #tpu.dot_dimension_numbers<[1], [0], [0], [1], [0, 0, 1, 1], [], []>} : vector<48x128xbf16>, vector<128x128xbf16>, vector<48x128xf32> -> vector<48x128xf32>
    %14 = vector.broadcast %4 : vector<1x128xf32> to vector<48x128xf32>
    %15 = arith.addf %13, %14 : vector<48x128xf32>
    %c0_13 = arith.constant 0 : index
    %c0_14 = arith.constant 0 : index
    %16 = vector.load %arg14[%c0_13, %c0_14] : memref<48x128xf32, #tpu.memory_space<vmem>>, vector<48x128xf32>
    tpu.vector_store %arg14[%c0_13, %c0_14], %15 {strides = array<i32>} : memref<48x128xf32, #tpu.memory_space<vmem>>, vector<48x128xf32>,
    %c0_15 = arith.constant 0 : index
    %c0_16 = arith.constant 0 : index
    %17 = vector.load %arg5[%c0_15, %c0_16] : memref<32x128xbf16, #tpu.memory_space<vmem>>, vector<32x128xbf16>
    %c0_i32_17 = arith.constant 0 : i32
    %c0_18 = arith.constant 0 : index
    %c0_19 = arith.constant 0 : index
    %18 = vector.load %arg11[%c0_18, %c0_19] : memref<8x32xf32, #tpu.memory_space<vmem>>, vector<8x32xf32>
    %c0_20 = arith.constant 0 : index
    %c0_21 = arith.constant 0 : index
    %19 = vector.load %arg12[%c0_20, %c0_21] : memref<8x32xf32, #tpu.memory_space<vmem>>, vector<8x32xf32>
    %c8_i32 = arith.constant 8 : i32
    %20 = arith.muli %c0_i32_17, %c8_i32 : i32
    %21 = tpu.assume_multiple %20, 8 : i32
    %22 = arith.truncf %18 : vector<8x32xf32> to vector<8x32xbf16>
    %cst_22 = arith.constant dense<0.000000e+00> : vector<8x128xf32>
    %23 = tpu.matmul %22, %17, %cst_22 {dimension_numbers = #tpu.dot_dimension_numbers<[1], [0], [0], [1], [0, 0, 1, 1], [], []>} : vector<8x32xbf16>, vector<32x128xbf16>, vector<8x128xf32> -> vector<8x128xf32>
    %24 = arith.index_cast %21 : i32 to index
    %c0_23 = arith.constant 0 : index
    %25 = vector.load %arg13[%24, %c0_23] : memref<48x128xf32, #tpu.memory_space<vmem>>, vector<8x128xf32>
    %26 = arith.addf %25, %23 : vector<8x128xf32>
    %27 = vector.extract_strided_slice %26 {offsets = [0, 0], sizes = [8, 96], strides = [1, 1]} : vector<8x128xf32> to vector<8x96xf32>
    %28 = arith.negf %27 : vector<8x96xf32>
    %29 = math.exp %28 : vector<8x96xf32>
    %cst_24 = arith.constant 1.000000e+00 : f32
    %30 = vector.broadcast %cst_24 : f32 to vector<8x96xf32>
    %31 = arith.addf %30, %29 : vector<8x96xf32>
    %32 = arith.divf %30, %31 : vector<8x96xf32>
    %33 = vector.extract_strided_slice %32 {offsets = [0, 0], sizes = [8, 32], strides = [1, 1]} : vector<8x96xf32> to vector<8x32xf32>
    %34 = vector.extract_strided_slice %32 {offsets = [0, 32], sizes = [8, 32], strides = [1, 1]} : vector<8x96xf32> to vector<8x32xf32>
    %35 = vector.extract_strided_slice %32 {offsets = [0, 64], sizes = [8, 32], strides = [1, 1]} : vector<8x96xf32> to vector<8x32xf32>
    %36 = vector.extract_strided_slice %26 {offsets = [0, 96], sizes = [8, 32], strides = [1, 1]} : vector<8x128xf32> to vector<8x32xf32>
    %37 = math.tanh %36 : vector<8x32xf32>
    %38 = arith.mulf %34, %19 : vector<8x32xf32>
    %39 = arith.mulf %33, %37 : vector<8x32xf32>
    %40 = arith.addf %38, %39 : vector<8x32xf32>
    %41 = math.tanh %40 : vector<8x32xf32>
    %42 = arith.mulf %35, %41 : vector<8x32xf32>
    %43 = tpu.concatenate %42, %18, %19, %40 in 1 : vector<8x32xf32>, vector<8x32xf32>, vector<8x32xf32>, vector<8x32xf32> -> vector<8x128xf32>
    %44 = arith.index_cast %21 : i32 to index
    %c0_25 = arith.constant 0 : index
    %45 = vector.load %arg15[%44, %c0_25] : memref<48x128xf32, #tpu.memory_space<vmem>>, vector<8x128xf32>
    tpu.vector_store %arg15[%44, %c0_25], %43 {strides = array<i32>} : memref<48x128xf32, #tpu.memory_space<vmem>>, vector<8x128xf32>,
    %c0_26 = arith.constant 0 : index
    %c0_27 = arith.constant 0 : index
    %46 = vector.load %arg11[%c0_26, %c0_27] : memref<8x32xf32, #tpu.memory_space<vmem>>, vector<8x32xf32>
    tpu.vector_store %arg11[%c0_26, %c0_27], %42 {strides = array<i32>} : memref<8x32xf32, #tpu.memory_space<vmem>>, vector<8x32xf32>,
    %c0_28 = arith.constant 0 : index
    %c0_29 = arith.constant 0 : index
    %47 = vector.load %arg12[%c0_28, %c0_29] : memref<8x32xf32, #tpu.memory_space<vmem>>, vector<8x32xf32>
    tpu.vector_store %arg12[%c0_28, %c0_29], %40 {strides = array<i32>} : memref<8x32xf32, #tpu.memory_space<vmem>>, vector<8x32xf32>,
    %c1_i32 = arith.constant 1 : i32
    %c0_30 = arith.constant 0 : index
    %c0_31 = arith.constant 0 : index
    %48 = vector.load %arg11[%c0_30, %c0_31] : memref<8x32xf32, #tpu.memory_space<vmem>>, vector<8x32xf32>
    %c0_32 = arith.constant 0 : index
    %c0_33 = arith.constant 0 : index
    %49 = vector.load %arg12[%c0_32, %c0_33] : memref<8x32xf32, #tpu.memory_space<vmem>>, vector<8x32xf32>
    %c8_i32_34 = arith.constant 8 : i32
    %50 = arith.muli %c1_i32, %c8_i32_34 : i32
    %51 = tpu.assume_multiple %50, 8 : i32
    %52 = arith.truncf %48 : vector<8x32xf32> to vector<8x32xbf16>
    %cst_35 = arith.constant dense<0.000000e+00> : vector<8x128xf32>
    %53 = tpu.matmul %52, %17, %cst_35 {dimension_numbers = #tpu.dot_dimension_numbers<[1], [0], [0], [1], [0, 0, 1, 1], [], []>} : vector<8x32xbf16>, vector<32x128xbf16>, vector<8x128xf32> -> vector<8x128xf32>
    %54 = arith.index_cast %51 : i32 to index
    %c0_36 = arith.constant 0 : index
    %55 = vector.load %arg13[%54, %c0_36] : memref<48x128xf32, #tpu.memory_space<vmem>>, vector<8x128xf32>
    %56 = arith.addf %55, %53 : vector<8x128xf32>
    %57 = vector.extract_strided_slice %56 {offsets = [0, 0], sizes = [8, 96], strides = [1, 1]} : vector<8x128xf32> to vector<8x96xf32>
    %58 = arith.negf %57 : vector<8x96xf32>
    %59 = math.exp %58 : vector<8x96xf32>
    %cst_37 = arith.constant 1.000000e+00 : f32
    %60 = vector.broadcast %cst_37 : f32 to vector<8x96xf32>
    %61 = arith.addf %60, %59 : vector<8x96xf32>
    %62 = arith.divf %60, %61 : vector<8x96xf32>
    %63 = vector.extract_strided_slice %62 {offsets = [0, 0], sizes = [8, 32], strides = [1, 1]} : vector<8x96xf32> to vector<8x32xf32>
    %64 = vector.extract_strided_slice %62 {offsets = [0, 32], sizes = [8, 32], strides = [1, 1]} : vector<8x96xf32> to vector<8x32xf32>
    %65 = vector.extract_strided_slice %62 {offsets = [0, 64], sizes = [8, 32], strides = [1, 1]} : vector<8x96xf32> to vector<8x32xf32>
    %66 = vector.extract_strided_slice %56 {offsets = [0, 96], sizes = [8, 32], strides = [1, 1]} : vector<8x128xf32> to vector<8x32xf32>
    %67 = math.tanh %66 : vector<8x32xf32>
    %68 = arith.mulf %64, %49 : vector<8x32xf32>
    %69 = arith.mulf %63, %67 : vector<8x32xf32>
    %70 = arith.addf %68, %69 : vector<8x32xf32>
    %71 = math.tanh %70 : vector<8x32xf32>
    %72 = arith.mulf %65, %71 : vector<8x32xf32>
    %73 = tpu.concatenate %72, %48, %49, %70 in 1 : vector<8x32xf32>, vector<8x32xf32>, vector<8x32xf32>, vector<8x32xf32> -> vector<8x128xf32>
    %74 = arith.index_cast %51 : i32 to index
    %c0_38 = arith.constant 0 : index
    %75 = vector.load %arg15[%74, %c0_38] : memref<48x128xf32, #tpu.memory_space<vmem>>, vector<8x128xf32>
    tpu.vector_store %arg15[%74, %c0_38], %73 {strides = array<i32>} : memref<48x128xf32, #tpu.memory_space<vmem>>, vector<8x128xf32>,
    %c0_39 = arith.constant 0 : index
    %c0_40 = arith.constant 0 : index
    %76 = vector.load %arg11[%c0_39, %c0_40] : memref<8x32xf32, #tpu.memory_space<vmem>>, vector<8x32xf32>
    tpu.vector_store %arg11[%c0_39, %c0_40], %72 {strides = array<i32>} : memref<8x32xf32, #tpu.memory_space<vmem>>, vector<8x32xf32>,
    %c0_41 = arith.constant 0 : index
    %c0_42 = arith.constant 0 : index
    %77 = vector.load %arg12[%c0_41, %c0_42] : memref<8x32xf32, #tpu.memory_space<vmem>>, vector<8x32xf32>
    tpu.vector_store %arg12[%c0_41, %c0_42], %70 {strides = array<i32>} : memref<8x32xf32, #tpu.memory_space<vmem>>, vector<8x32xf32>,
    %c2_i32 = arith.constant 2 : i32
    %c0_43 = arith.constant 0 : index
    %c0_44 = arith.constant 0 : index
    %78 = vector.load %arg11[%c0_43, %c0_44] : memref<8x32xf32, #tpu.memory_space<vmem>>, vector<8x32xf32>
    %c0_45 = arith.constant 0 : index
    %c0_46 = arith.constant 0 : index
    %79 = vector.load %arg12[%c0_45, %c0_46] : memref<8x32xf32, #tpu.memory_space<vmem>>, vector<8x32xf32>
    %c8_i32_47 = arith.constant 8 : i32
    %80 = arith.muli %c2_i32, %c8_i32_47 : i32
    %81 = tpu.assume_multiple %80, 8 : i32
    %82 = arith.truncf %78 : vector<8x32xf32> to vector<8x32xbf16>
    %cst_48 = arith.constant dense<0.000000e+00> : vector<8x128xf32>
    %83 = tpu.matmul %82, %17, %cst_48 {dimension_numbers = #tpu.dot_dimension_numbers<[1], [0], [0], [1], [0, 0, 1, 1], [], []>} : vector<8x32xbf16>, vector<32x128xbf16>, vector<8x128xf32> -> vector<8x128xf32>
    %84 = arith.index_cast %81 : i32 to index
    %c0_49 = arith.constant 0 : index
    %85 = vector.load %arg13[%84, %c0_49] : memref<48x128xf32, #tpu.memory_space<vmem>>, vector<8x128xf32>
    %86 = arith.addf %85, %83 : vector<8x128xf32>
    %87 = vector.extract_strided_slice %86 {offsets = [0, 0], sizes = [8, 96], strides = [1, 1]} : vector<8x128xf32> to vector<8x96xf32>
    %88 = arith.negf %87 : vector<8x96xf32>
    %89 = math.exp %88 : vector<8x96xf32>
    %cst_50 = arith.constant 1.000000e+00 : f32
    %90 = vector.broadcast %cst_50 : f32 to vector<8x96xf32>
    %91 = arith.addf %90, %89 : vector<8x96xf32>
    %92 = arith.divf %90, %91 : vector<8x96xf32>
    %93 = vector.extract_strided_slice %92 {offsets = [0, 0], sizes = [8, 32], strides = [1, 1]} : vector<8x96xf32> to vector<8x32xf32>
    %94 = vector.extract_strided_slice %92 {offsets = [0, 32], sizes = [8, 32], strides = [1, 1]} : vector<8x96xf32> to vector<8x32xf32>
    %95 = vector.extract_strided_slice %92 {offsets = [0, 64], sizes = [8, 32], strides = [1, 1]} : vector<8x96xf32> to vector<8x32xf32>
    %96 = vector.extract_strided_slice %86 {offsets = [0, 96], sizes = [8, 32], strides = [1, 1]} : vector<8x128xf32> to vector<8x32xf32>
    %97 = math.tanh %96 : vector<8x32xf32>
    %98 = arith.mulf %94, %79 : vector<8x32xf32>
    %99 = arith.mulf %93, %97 : vector<8x32xf32>
    %100 = arith.addf %98, %99 : vector<8x32xf32>
    %101 = math.tanh %100 : vector<8x32xf32>
    %102 = arith.mulf %95, %101 : vector<8x32xf32>
    %103 = tpu.concatenate %102, %78, %79, %100 in 1 : vector<8x32xf32>, vector<8x32xf32>, vector<8x32xf32>, vector<8x32xf32> -> vector<8x128xf32>
    %104 = arith.index_cast %81 : i32 to index
    %c0_51 = arith.constant 0 : index
    %105 = vector.load %arg15[%104, %c0_51] : memref<48x128xf32, #tpu.memory_space<vmem>>, vector<8x128xf32>
    tpu.vector_store %arg15[%104, %c0_51], %103 {strides = array<i32>} : memref<48x128xf32, #tpu.memory_space<vmem>>, vector<8x128xf32>,
    %c0_52 = arith.constant 0 : index
    %c0_53 = arith.constant 0 : index
    %106 = vector.load %arg11[%c0_52, %c0_53] : memref<8x32xf32, #tpu.memory_space<vmem>>, vector<8x32xf32>
    tpu.vector_store %arg11[%c0_52, %c0_53], %102 {strides = array<i32>} : memref<8x32xf32, #tpu.memory_space<vmem>>, vector<8x32xf32>,
    %c0_54 = arith.constant 0 : index
    %c0_55 = arith.constant 0 : index
    %107 = vector.load %arg12[%c0_54, %c0_55] : memref<8x32xf32, #tpu.memory_space<vmem>>, vector<8x32xf32>
    tpu.vector_store %arg12[%c0_54, %c0_55], %100 {strides = array<i32>} : memref<8x32xf32, #tpu.memory_space<vmem>>, vector<8x32xf32>,
    %c3_i32 = arith.constant 3 : i32
    %c0_56 = arith.constant 0 : index
    %c0_57 = arith.constant 0 : index
    %108 = vector.load %arg11[%c0_56, %c0_57] : memref<8x32xf32, #tpu.memory_space<vmem>>, vector<8x32xf32>
    %c0_58 = arith.constant 0 : index
    %c0_59 = arith.constant 0 : index
    %109 = vector.load %arg12[%c0_58, %c0_59] : memref<8x32xf32, #tpu.memory_space<vmem>>, vector<8x32xf32>
    %c8_i32_60 = arith.constant 8 : i32
    %110 = arith.muli %c3_i32, %c8_i32_60 : i32
    %111 = tpu.assume_multiple %110, 8 : i32
    %112 = arith.truncf %108 : vector<8x32xf32> to vector<8x32xbf16>
    %cst_61 = arith.constant dense<0.000000e+00> : vector<8x128xf32>
    %113 = tpu.matmul %112, %17, %cst_61 {dimension_numbers = #tpu.dot_dimension_numbers<[1], [0], [0], [1], [0, 0, 1, 1], [], []>} : vector<8x32xbf16>, vector<32x128xbf16>, vector<8x128xf32> -> vector<8x128xf32>
    %114 = arith.index_cast %111 : i32 to index
    %c0_62 = arith.constant 0 : index
    %115 = vector.load %arg13[%114, %c0_62] : memref<48x128xf32, #tpu.memory_space<vmem>>, vector<8x128xf32>
    %116 = arith.addf %115, %113 : vector<8x128xf32>
    %117 = vector.extract_strided_slice %116 {offsets = [0, 0], sizes = [8, 96], strides = [1, 1]} : vector<8x128xf32> to vector<8x96xf32>
    %118 = arith.negf %117 : vector<8x96xf32>
    %119 = math.exp %118 : vector<8x96xf32>
    %cst_63 = arith.constant 1.000000e+00 : f32
    %120 = vector.broadcast %cst_63 : f32 to vector<8x96xf32>
    %121 = arith.addf %120, %119 : vector<8x96xf32>
    %122 = arith.divf %120, %121 : vector<8x96xf32>
    %123 = vector.extract_strided_slice %122 {offsets = [0, 0], sizes = [8, 32], strides = [1, 1]} : vector<8x96xf32> to vector<8x32xf32>
    %124 = vector.extract_strided_slice %122 {offsets = [0, 32], sizes = [8, 32], strides = [1, 1]} : vector<8x96xf32> to vector<8x32xf32>
    %125 = vector.extract_strided_slice %122 {offsets = [0, 64], sizes = [8, 32], strides = [1, 1]} : vector<8x96xf32> to vector<8x32xf32>
    %126 = vector.extract_strided_slice %116 {offsets = [0, 96], sizes = [8, 32], strides = [1, 1]} : vector<8x128xf32> to vector<8x32xf32>
    %127 = math.tanh %126 : vector<8x32xf32>
    %128 = arith.mulf %124, %109 : vector<8x32xf32>
    %129 = arith.mulf %123, %127 : vector<8x32xf32>
    %130 = arith.addf %128, %129 : vector<8x32xf32>
    %131 = math.tanh %130 : vector<8x32xf32>
    %132 = arith.mulf %125, %131 : vector<8x32xf32>
    %133 = tpu.concatenate %132, %108, %109, %130 in 1 : vector<8x32xf32>, vector<8x32xf32>, vector<8x32xf32>, vector<8x32xf32> -> vector<8x128xf32>
    %134 = arith.index_cast %111 : i32 to index
    %c0_64 = arith.constant 0 : index
    %135 = vector.load %arg15[%134, %c0_64] : memref<48x128xf32, #tpu.memory_space<vmem>>, vector<8x128xf32>
    tpu.vector_store %arg15[%134, %c0_64], %133 {strides = array<i32>} : memref<48x128xf32, #tpu.memory_space<vmem>>, vector<8x128xf32>,
    %c0_65 = arith.constant 0 : index
    %c0_66 = arith.constant 0 : index
    %136 = vector.load %arg11[%c0_65, %c0_66] : memref<8x32xf32, #tpu.memory_space<vmem>>, vector<8x32xf32>
    tpu.vector_store %arg11[%c0_65, %c0_66], %132 {strides = array<i32>} : memref<8x32xf32, #tpu.memory_space<vmem>>, vector<8x32xf32>,
    %c0_67 = arith.constant 0 : index
    %c0_68 = arith.constant 0 : index
    %137 = vector.load %arg12[%c0_67, %c0_68] : memref<8x32xf32, #tpu.memory_space<vmem>>, vector<8x32xf32>
    tpu.vector_store %arg12[%c0_67, %c0_68], %130 {strides = array<i32>} : memref<8x32xf32, #tpu.memory_space<vmem>>, vector<8x32xf32>,
    %c4_i32 = arith.constant 4 : i32
    %c0_69 = arith.constant 0 : index
    %c0_70 = arith.constant 0 : index
    %138 = vector.load %arg11[%c0_69, %c0_70] : memref<8x32xf32, #tpu.memory_space<vmem>>, vector<8x32xf32>
    %c0_71 = arith.constant 0 : index
    %c0_72 = arith.constant 0 : index
    %139 = vector.load %arg12[%c0_71, %c0_72] : memref<8x32xf32, #tpu.memory_space<vmem>>, vector<8x32xf32>
    %c8_i32_73 = arith.constant 8 : i32
    %140 = arith.muli %c4_i32, %c8_i32_73 : i32
    %141 = tpu.assume_multiple %140, 8 : i32
    %142 = arith.truncf %138 : vector<8x32xf32> to vector<8x32xbf16>
    %cst_74 = arith.constant dense<0.000000e+00> : vector<8x128xf32>
    %143 = tpu.matmul %142, %17, %cst_74 {dimension_numbers = #tpu.dot_dimension_numbers<[1], [0], [0], [1], [0, 0, 1, 1], [], []>} : vector<8x32xbf16>, vector<32x128xbf16>, vector<8x128xf32> -> vector<8x128xf32>
    %144 = arith.index_cast %141 : i32 to index
    %c0_75 = arith.constant 0 : index
    %145 = vector.load %arg13[%144, %c0_75] : memref<48x128xf32, #tpu.memory_space<vmem>>, vector<8x128xf32>
    %146 = arith.addf %145, %143 : vector<8x128xf32>
    %147 = vector.extract_strided_slice %146 {offsets = [0, 0], sizes = [8, 96], strides = [1, 1]} : vector<8x128xf32> to vector<8x96xf32>
    %148 = arith.negf %147 : vector<8x96xf32>
    %149 = math.exp %148 : vector<8x96xf32>
    %cst_76 = arith.constant 1.000000e+00 : f32
    %150 = vector.broadcast %cst_76 : f32 to vector<8x96xf32>
    %151 = arith.addf %150, %149 : vector<8x96xf32>
    %152 = arith.divf %150, %151 : vector<8x96xf32>
    %153 = vector.extract_strided_slice %152 {offsets = [0, 0], sizes = [8, 32], strides = [1, 1]} : vector<8x96xf32> to vector<8x32xf32>
    %154 = vector.extract_strided_slice %152 {offsets = [0, 32], sizes = [8, 32], strides = [1, 1]} : vector<8x96xf32> to vector<8x32xf32>
    %155 = vector.extract_strided_slice %152 {offsets = [0, 64], sizes = [8, 32], strides = [1, 1]} : vector<8x96xf32> to vector<8x32xf32>
    %156 = vector.extract_strided_slice %146 {offsets = [0, 96], sizes = [8, 32], strides = [1, 1]} : vector<8x128xf32> to vector<8x32xf32>
    %157 = math.tanh %156 : vector<8x32xf32>
    %158 = arith.mulf %154, %139 : vector<8x32xf32>
    %159 = arith.mulf %153, %157 : vector<8x32xf32>
    %160 = arith.addf %158, %159 : vector<8x32xf32>
    %161 = math.tanh %160 : vector<8x32xf32>
    %162 = arith.mulf %155, %161 : vector<8x32xf32>
    %163 = tpu.concatenate %162, %138, %139, %160 in 1 : vector<8x32xf32>, vector<8x32xf32>, vector<8x32xf32>, vector<8x32xf32> -> vector<8x128xf32>
    %164 = arith.index_cast %141 : i32 to index
    %c0_77 = arith.constant 0 : index
    %165 = vector.load %arg15[%164, %c0_77] : memref<48x128xf32, #tpu.memory_space<vmem>>, vector<8x128xf32>
    tpu.vector_store %arg15[%164, %c0_77], %163 {strides = array<i32>} : memref<48x128xf32, #tpu.memory_space<vmem>>, vector<8x128xf32>,
    %c0_78 = arith.constant 0 : index
    %c0_79 = arith.constant 0 : index
    %166 = vector.load %arg11[%c0_78, %c0_79] : memref<8x32xf32, #tpu.memory_space<vmem>>, vector<8x32xf32>
    tpu.vector_store %arg11[%c0_78, %c0_79], %162 {strides = array<i32>} : memref<8x32xf32, #tpu.memory_space<vmem>>, vector<8x32xf32>,
    %c0_80 = arith.constant 0 : index
    %c0_81 = arith.constant 0 : index
    %167 = vector.load %arg12[%c0_80, %c0_81] : memref<8x32xf32, #tpu.memory_space<vmem>>, vector<8x32xf32>
    tpu.vector_store %arg12[%c0_80, %c0_81], %160 {strides = array<i32>} : memref<8x32xf32, #tpu.memory_space<vmem>>, vector<8x32xf32>,
    %c5_i32 = arith.constant 5 : i32
    %c0_82 = arith.constant 0 : index
    %c0_83 = arith.constant 0 : index
    %168 = vector.load %arg11[%c0_82, %c0_83] : memref<8x32xf32, #tpu.memory_space<vmem>>, vector<8x32xf32>
    %c0_84 = arith.constant 0 : index
    %c0_85 = arith.constant 0 : index
    %169 = vector.load %arg12[%c0_84, %c0_85] : memref<8x32xf32, #tpu.memory_space<vmem>>, vector<8x32xf32>
    %c8_i32_86 = arith.constant 8 : i32
    %170 = arith.muli %c5_i32, %c8_i32_86 : i32
    %171 = tpu.assume_multiple %170, 8 : i32
    %172 = arith.truncf %168 : vector<8x32xf32> to vector<8x32xbf16>
    %cst_87 = arith.constant dense<0.000000e+00> : vector<8x128xf32>
    %173 = tpu.matmul %172, %17, %cst_87 {dimension_numbers = #tpu.dot_dimension_numbers<[1], [0], [0], [1], [0, 0, 1, 1], [], []>} : vector<8x32xbf16>, vector<32x128xbf16>, vector<8x128xf32> -> vector<8x128xf32>
    %174 = arith.index_cast %171 : i32 to index
    %c0_88 = arith.constant 0 : index
    %175 = vector.load %arg13[%174, %c0_88] : memref<48x128xf32, #tpu.memory_space<vmem>>, vector<8x128xf32>
    %176 = arith.addf %175, %173 : vector<8x128xf32>
    %177 = vector.extract_strided_slice %176 {offsets = [0, 0], sizes = [8, 96], strides = [1, 1]} : vector<8x128xf32> to vector<8x96xf32>
    %178 = arith.negf %177 : vector<8x96xf32>
    %179 = math.exp %178 : vector<8x96xf32>
    %cst_89 = arith.constant 1.000000e+00 : f32
    %180 = vector.broadcast %cst_89 : f32 to vector<8x96xf32>
    %181 = arith.addf %180, %179 : vector<8x96xf32>
    %182 = arith.divf %180, %181 : vector<8x96xf32>
    %183 = vector.extract_strided_slice %182 {offsets = [0, 0], sizes = [8, 32], strides = [1, 1]} : vector<8x96xf32> to vector<8x32xf32>
    %184 = vector.extract_strided_slice %182 {offsets = [0, 32], sizes = [8, 32], strides = [1, 1]} : vector<8x96xf32> to vector<8x32xf32>
    %185 = vector.extract_strided_slice %182 {offsets = [0, 64], sizes = [8, 32], strides = [1, 1]} : vector<8x96xf32> to vector<8x32xf32>
    %186 = vector.extract_strided_slice %176 {offsets = [0, 96], sizes = [8, 32], strides = [1, 1]} : vector<8x128xf32> to vector<8x32xf32>
    %187 = math.tanh %186 : vector<8x32xf32>
    %188 = arith.mulf %184, %169 : vector<8x32xf32>
    %189 = arith.mulf %183, %187 : vector<8x32xf32>
    %190 = arith.addf %188, %189 : vector<8x32xf32>
    %191 = math.tanh %190 : vector<8x32xf32>
    %192 = arith.mulf %185, %191 : vector<8x32xf32>
    %193 = tpu.concatenate %192, %168, %169, %190 in 1 : vector<8x32xf32>, vector<8x32xf32>, vector<8x32xf32>, vector<8x32xf32> -> vector<8x128xf32>
    %194 = arith.index_cast %171 : i32 to index
    %c0_90 = arith.constant 0 : index
    %195 = vector.load %arg15[%194, %c0_90] : memref<48x128xf32, #tpu.memory_space<vmem>>, vector<8x128xf32>
    tpu.vector_store %arg15[%194, %c0_90], %193 {strides = array<i32>} : memref<48x128xf32, #tpu.memory_space<vmem>>, vector<8x128xf32>,
    %c0_91 = arith.constant 0 : index
    %c0_92 = arith.constant 0 : index
    %196 = vector.load %arg11[%c0_91, %c0_92] : memref<8x32xf32, #tpu.memory_space<vmem>>, vector<8x32xf32>
    tpu.vector_store %arg11[%c0_91, %c0_92], %192 {strides = array<i32>} : memref<8x32xf32, #tpu.memory_space<vmem>>, vector<8x32xf32>,
    %c0_93 = arith.constant 0 : index
    %c0_94 = arith.constant 0 : index
    %197 = vector.load %arg12[%c0_93, %c0_94] : memref<8x32xf32, #tpu.memory_space<vmem>>, vector<8x32xf32>
    tpu.vector_store %arg12[%c0_93, %c0_94], %190 {strides = array<i32>} : memref<8x32xf32, #tpu.memory_space<vmem>>, vector<8x32xf32>,
    %c6_i32 = arith.constant 6 : i32
    %c0_95 = arith.constant 0 : index
    %c0_96 = arith.constant 0 : index
    %198 = vector.load %arg15[%c0_95, %c0_96] : memref<48x128xf32, #tpu.memory_space<vmem>>, vector<48x128xf32>
    %199 = vector.extract_strided_slice %198 {offsets = [0, 0], sizes = [48, 32], strides = [1, 1]} : vector<48x128xf32> to vector<48x32xf32>
    %200 = vector.extract_strided_slice %198 {offsets = [0, 32], sizes = [48, 32], strides = [1, 1]} : vector<48x128xf32> to vector<48x32xf32>
    %201 = vector.extract_strided_slice %198 {offsets = [0, 64], sizes = [48, 32], strides = [1, 1]} : vector<48x128xf32> to vector<48x32xf32>
    %202 = arith.truncf %200 : vector<48x32xf32> to vector<48x32xbf16>
    %cst_97 = arith.constant dense<0.000000e+00> : vector<48x128xf32>
    %203 = tpu.matmul %202, %17, %cst_97 {dimension_numbers = #tpu.dot_dimension_numbers<[1], [0], [0], [1], [0, 0, 1, 1], [], []>} : vector<48x32xbf16>, vector<32x128xbf16>, vector<48x128xf32> -> vector<48x128xf32>
    %c0_98 = arith.constant 0 : index
    %c0_99 = arith.constant 0 : index
    %204 = vector.load %arg14[%c0_98, %c0_99] : memref<48x128xf32, #tpu.memory_space<vmem>>, vector<48x128xf32>
    %205 = arith.addf %204, %203 : vector<48x128xf32>
    %206 = vector.extract_strided_slice %205 {offsets = [0, 0], sizes = [48, 96], strides = [1, 1]} : vector<48x128xf32> to vector<48x96xf32>
    %207 = arith.negf %206 : vector<48x96xf32>
    %208 = math.exp %207 : vector<48x96xf32>
    %cst_100 = arith.constant 1.000000e+00 : f32
    %209 = vector.broadcast %cst_100 : f32 to vector<48x96xf32>
    %210 = arith.addf %209, %208 : vector<48x96xf32>
    %211 = arith.divf %209, %210 : vector<48x96xf32>
    %212 = vector.extract_strided_slice %211 {offsets = [0, 0], sizes = [48, 32], strides = [1, 1]} : vector<48x96xf32> to vector<48x32xf32>
    %213 = vector.extract_strided_slice %211 {offsets = [0, 32], sizes = [48, 32], strides = [1, 1]} : vector<48x96xf32> to vector<48x32xf32>
    %214 = vector.extract_strided_slice %211 {offsets = [0, 64], sizes = [48, 32], strides = [1, 1]} : vector<48x96xf32> to vector<48x32xf32>
    %215 = vector.extract_strided_slice %205 {offsets = [0, 96], sizes = [48, 32], strides = [1, 1]} : vector<48x128xf32> to vector<48x32xf32>
    %216 = math.tanh %215 : vector<48x32xf32>
    %217 = arith.mulf %213, %201 : vector<48x32xf32>
    %218 = arith.mulf %212, %216 : vector<48x32xf32>
    %219 = arith.addf %217, %218 : vector<48x32xf32>
    %220 = math.tanh %219 : vector<48x32xf32>
    %221 = arith.mulf %214, %220 : vector<48x32xf32>
    %222 = tpu.concatenate %199, %221 in 1 : vector<48x32xf32>, vector<48x32xf32> -> vector<48x64xf32>
    %223 = tpu.concatenate %221, %199 in 1 : vector<48x32xf32>, vector<48x32xf32> -> vector<48x64xf32>
    %224 = tpu.concatenate %222, %223 in 0 : vector<48x64xf32>, vector<48x64xf32> -> vector<96x64xf32>
    %225 = arith.truncf %224 : vector<96x64xf32> to vector<96x64xbf16>
    %c0_101 = arith.constant 0 : index
    %c0_102 = arith.constant 0 : index
    %226 = vector.load %arg6[%c0_101, %c0_102] : memref<64x128xbf16, #tpu.memory_space<vmem>>, vector<64x128xbf16>
    %cst_103 = arith.constant dense<0.000000e+00> : vector<96x128xf32>
    %227 = tpu.matmul %225, %226, %cst_103 {dimension_numbers = #tpu.dot_dimension_numbers<[1], [0], [0], [1], [0, 0, 1, 1], [], []>} : vector<96x64xbf16>, vector<64x128xbf16>, vector<96x128xf32> -> vector<96x128xf32>
    %c0_104 = arith.constant 0 : index
    %c0_105 = arith.constant 0 : index
    %228 = vector.load %arg7[%c0_104, %c0_105] : memref<1x128xf32, #tpu.memory_space<vmem>>, vector<1x128xf32>
    %229 = vector.broadcast %228 : vector<1x128xf32> to vector<96x128xf32>
    %230 = arith.addf %227, %229 : vector<96x128xf32>
    %cst_106 = arith.constant 0.000000e+00 : f32
    %231 = vector.broadcast %cst_106 : f32 to vector<96x128xf32>
    %232 = arith.maximumf %230, %231 : vector<96x128xf32>
    %233 = arith.truncf %232 : vector<96x128xf32> to vector<96x128xbf16>
    %c0_107 = arith.constant 0 : index
    %c0_108 = arith.constant 0 : index
    %234 = vector.load %arg8[%c0_107, %c0_108] : memref<128x64xbf16, #tpu.memory_space<vmem>>, vector<128x64xbf16>
    %cst_109 = arith.constant dense<0.000000e+00> : vector<96x64xf32>
    %235 = tpu.matmul %233, %234, %cst_109 {dimension_numbers = #tpu.dot_dimension_numbers<[1], [0], [0], [1], [0, 0, 1, 1], [], []>} : vector<96x128xbf16>, vector<128x64xbf16>, vector<96x64xf32> -> vector<96x64xf32>
    %c0_110 = arith.constant 0 : index
    %c0_111 = arith.constant 0 : index
    %236 = vector.load %arg9[%c0_110, %c0_111] : memref<1x64xf32, #tpu.memory_space<vmem>>, vector<1x64xf32>
    %237 = vector.broadcast %236 : vector<1x64xf32> to vector<96x64xf32>
    %238 = arith.addf %235, %237 : vector<96x64xf32>
    %239 = vector.extract_strided_slice %238 {offsets = [0, 0], sizes = [48, 64], strides = [1, 1]} : vector<96x64xf32> to vector<48x64xf32>
    %240 = vector.extract_strided_slice %238 {offsets = [48, 0], sizes = [48, 64], strides = [1, 1]} : vector<96x64xf32> to vector<48x64xf32>
    %241 = tpu.concatenate %239, %240 in 1 : vector<48x64xf32>, vector<48x64xf32> -> vector<48x128xf32>
    %242 = vector.shape_cast %241 : vector<48x128xf32> to vector<6x8x128xf32>
    %c0_112 = arith.constant 0 : index
    %c0_113 = arith.constant 0 : index
    %c0_114 = arith.constant 0 : index
    %243 = vector.load %arg10[%c0_112, %c0_113, %c0_114] : memref<6x8x128xf32, #tpu.memory_space<vmem>>, vector<6x8x128xf32>
    tpu.vector_store %arg10[%c0_112, %c0_113, %c0_114], %242 {strides = array<i32>} : memref<6x8x128xf32, #tpu.memory_space<vmem>>, vector<6x8x128xf32>,
    return
  }
  func.func @transform_0(%arg0: i32) -> (i32, i32, i32) {
    %c0_i32 = arith.constant 0 : i32
    %c0_i32_0 = arith.constant 0 : i32
    %c0_i32_1 = arith.constant 0 : i32
    return %arg0, %c0_i32, %c0_i32_0 : i32, i32, i32
  }
  func.func @transform_1(%arg0: i32) -> (i32, i32, i32) {
    %c0_i32 = arith.constant 0 : i32
    %c0_i32_0 = arith.constant 0 : i32
    %c0_i32_1 = arith.constant 0 : i32
    return %arg0, %c0_i32, %c0_i32_0 : i32, i32, i32
  }
  func.func @transform_2(%arg0: i32) -> (i32, i32) {
    %c0_i32 = arith.constant 0 : i32
    %c0_i32_0 = arith.constant 0 : i32
    %c0_i32_1 = arith.constant 0 : i32
    return %c0_i32, %c0_i32_0 : i32, i32
  }
  func.func @transform_3(%arg0: i32) -> (i32, i32) {
    %c0_i32 = arith.constant 0 : i32
    %c0_i32_0 = arith.constant 0 : i32
    %c0_i32_1 = arith.constant 0 : i32
    return %c0_i32, %c0_i32_0 : i32, i32
  }
  func.func @transform_4(%arg0: i32) -> (i32, i32) {
    %c0_i32 = arith.constant 0 : i32
    %c0_i32_0 = arith.constant 0 : i32
    %c0_i32_1 = arith.constant 0 : i32
    return %c0_i32, %c0_i32_0 : i32, i32
  }
  func.func @transform_5(%arg0: i32) -> (i32, i32) {
    %c0_i32 = arith.constant 0 : i32
    %c0_i32_0 = arith.constant 0 : i32
    %c0_i32_1 = arith.constant 0 : i32
    return %c0_i32, %c0_i32_0 : i32, i32
  }
  func.func @transform_6(%arg0: i32) -> (i32, i32) {
    %c0_i32 = arith.constant 0 : i32
    %c0_i32_0 = arith.constant 0 : i32
    %c0_i32_1 = arith.constant 0 : i32
    return %c0_i32, %c0_i32_0 : i32, i32
  }
  func.func @transform_7(%arg0: i32) -> (i32, i32) {
    %c0_i32 = arith.constant 0 : i32
    %c0_i32_0 = arith.constant 0 : i32
    %c0_i32_1 = arith.constant 0 : i32
    return %c0_i32, %c0_i32_0 : i32, i32
  }
  func.func @transform_8(%arg0: i32) -> (i32, i32) {
    %c0_i32 = arith.constant 0 : i32
    %c0_i32_0 = arith.constant 0 : i32
    %c0_i32_1 = arith.constant 0 : i32
    return %c0_i32, %c0_i32_0 : i32, i32
  }
  func.func @transform_9(%arg0: i32) -> (i32, i32, i32) {
    %c0_i32 = arith.constant 0 : i32
    %c0_i32_0 = arith.constant 0 : i32
    %c0_i32_1 = arith.constant 0 : i32
    return %arg0, %c0_i32, %c0_i32_0 : i32, i32, i32
  }
}

</mosaic_0001>

<llo_original>
// kernel: frame_correlation_predict.1
$region0: #{frame_correlation_predict.1}
  #allocation0 [shape = 'u32[]', space=smem, size = 0x4, offset = 0x4, fixed_abs, tag = 'smem constant byte address 0x4 - core index']
  #allocation1 [shape = 'u32[144,128]{1,0:T(1,128)}', space=vmem, size = 0x12000, scoped, tag = 'internal scratch']
  #allocation2 [shape = 'f32[8,32]{1,0:T(8,128)}', space=vmem, size = 0x1000, scoped, tag = 'scratch operand']
  #allocation3 [shape = 'f32[8,32]{1,0:T(8,128)}', space=vmem, size = 0x1000, scoped, tag = 'scratch operand']
  #allocation4 [shape = 'f32[48,128]{1,0:T(8,128)}', space=vmem, size = 0x6000, scoped, tag = 'scratch operand']
  #allocation5 [shape = 'f32[48,128]{1,0:T(8,128)}', space=vmem, size = 0x6000, scoped, tag = 'scratch operand']
  #allocation6 [shape = 'f32[48,128]{1,0:T(8,128)}', space=vmem, size = 0x6000, scoped, tag = 'scratch operand']
  %s0 = inlined_call_operand.vmem [shape: bf16[6,8,128], index: 0, kind: input, shape index: {}]
  %s1 = inlined_call_operand.vmem [shape: bf16[6,8,128], index: 1, kind: input, shape index: {}]
  %s2 = inlined_call_operand.vmem [shape: bf16[128,128], index: 2, kind: input, shape index: {}]
  %s3 = inlined_call_operand.vmem [shape: f32[1,128], index: 3, kind: input, shape index: {}]
  %s4 = inlined_call_operand.vmem [shape: bf16[32,128], index: 4, kind: input, shape index: {}]
  %s5 = inlined_call_operand.vmem [shape: bf16[64,128], index: 5, kind: input, shape index: {}]
  %s6 = inlined_call_operand.vmem [shape: f32[1,128], index: 6, kind: input, shape index: {}]
  %s7 = inlined_call_operand.vmem [shape: bf16[128,64], index: 7, kind: input, shape index: {}]
  %s8 = inlined_call_operand.vmem [shape: f32[1,64], index: 8, kind: input, shape index: {}]
  %s9 = inlined_call_operand.vmem [shape: f32[6,8,128], index: 9, kind: output, shape index: {}]
  %s10 = sld [smem:[#allocation0]]
  $region50: #{frame_correlation_predict.1} parent=0
    _
  %s12 = ssub.s32 1, %s10
  %s13 = scalar_select 0, %s12, %s10
  // Predicated region
  $region2: #{frame_correlation_predict.1} parent=0 // pred_check
    _
  $region3: #{frame_correlation_predict.1} parent=0 // pred_check_branch
    %15 = sbr.rel (0) target = $region5
  $region4: #{frame_correlation_predict.1} parent=0 // pred_region
    _
  $region5: #{frame_correlation_predict.1} parent=0 // pred_fallthru
    _
  // Predicated region
  $region6: #{frame_correlation_predict.1} parent=0 // pred_check
    _
  $region7: #{frame_correlation_predict.1} parent=0 // pred_check_branch
    %17 = sbr.rel (0) target = $region9
  $region8: #{frame_correlation_predict.1} parent=0 // pred_region
    _
  $region9: #{frame_correlation_predict.1} parent=0 // pred_fallthru
    _
  // Predicated region
  $region10: #{frame_correlation_predict.1} parent=0 // pred_check
    _
  $region11: #{frame_correlation_predict.1} parent=0 // pred_check_branch
    %19 = sbr.rel (0) target = $region13
  $region12: #{frame_correlation_predict.1} parent=0 // pred_region
    _
  $region13: #{frame_correlation_predict.1} parent=0 // pred_fallthru
    _
  // Predicated region
  $region14: #{frame_correlation_predict.1} parent=0 // pred_check
    _
  $region15: #{frame_correlation_predict.1} parent=0 // pred_check_branch
    %21 = sbr.rel (0) target = $region17
  $region16: #{frame_correlation_predict.1} parent=0 // pred_region
    _
  $region17: #{frame_correlation_predict.1} parent=0 // pred_fallthru
    _
  // Predicated region
  $region18: #{frame_correlation_predict.1} parent=0 // pred_check
    _
  $region19: #{frame_correlation_predict.1} parent=0 // pred_check_branch
    %23 = sbr.rel (0) target = $region21
  $region20: #{frame_correlation_predict.1} parent=0 // pred_region
    _
  $region21: #{frame_correlation_predict.1} parent=0 // pred_fallthru
    _
  // Predicated region
  $region22: #{frame_correlation_predict.1} parent=0 // pred_check
    _
  $region23: #{frame_correlation_predict.1} parent=0 // pred_check_branch
    %25 = sbr.rel (0) target = $region25
  $region24: #{frame_correlation_predict.1} parent=0 // pred_region
    _
  $region25: #{frame_correlation_predict.1} parent=0 // pred_fallthru
    _
  // Predicated region
  $region26: #{frame_correlation_predict.1} parent=0 // pred_check
    _
  $region27: #{frame_correlation_predict.1} parent=0 // pred_check_branch
    %27 = sbr.rel (0) target = $region29
  $region28: #{frame_correlation_predict.1} parent=0 // pred_region
    _
  $region29: #{frame_correlation_predict.1} parent=0 // pred_fallthru
    _
  // Predicated region
  $region30: #{frame_correlation_predict.1} parent=0 // pred_check
    _
  $region31: #{frame_correlation_predict.1} parent=0 // pred_check_branch
    %29 = sbr.rel (0) target = $region33
  $region32: #{frame_correlation_predict.1} parent=0 // pred_region
    _
  $region33: #{frame_correlation_predict.1} parent=0 // pred_fallthru
    _
  // Predicated region
  $region34: #{frame_correlation_predict.1} parent=0 // pred_check
    _
  $region35: #{frame_correlation_predict.1} parent=0 // pred_check_branch
    %31 = sbr.rel (0) target = $region37
  $region36: #{frame_correlation_predict.1} parent=0 // pred_region
    _
  $region37: #{frame_correlation_predict.1} parent=0 // pred_fallthru
    _
  %p33 = scmp.eq.s32.totalorder 0, 0
  // Predicated region
  $region38: #{frame_correlation_predict.1} parent=0 // pred_check
    %p34 = pneg %p33
  $region39: #{frame_correlation_predict.1} parent=0 // pred_check_branch
    %36 = sbr.rel (%p34) target = $region41
  $region40: #{frame_correlation_predict.1} parent=0 // pred_region
    %vm37 = vcmask 261120
    %38 = vst.msk [vmem:[#allocation2] sm:$0xff] %vm37, 0.0
    %39 = vst.msk [vmem:[#allocation3] sm:$0xff] %vm37, 0.0
  $region41: #{frame_correlation_predict.1} parent=0 // pred_fallthru
    _
  %v40 = vld [vmem:[%s2] sm:$0xf]
  %v41 = vld [vmem:[%s2 + $0x4] sm:$0xf]
  %v42 = vld [vmem:[%s2 + $0x8] sm:$0xf]
  %v43 = vld [vmem:[%s2 + $0xc] sm:$0xf]
  %v44 = vld [vmem:[%s2 + $0x10] sm:$0xf]
  %v45 = vld [vmem:[%s2 + $0x14] sm:$0xf]
  %v46 = vld [vmem:[%s2 + $0x18] sm:$0xf]
  %v47 = vld [vmem:[%s2 + $0x1c] sm:$0xf]
  %v48 = vld [vmem:[%s2 + $0x20] sm:$0xf]
  %v49 = vld [vmem:[%s2 + $0x24] sm:$0xf]
  %v50 = vld [vmem:[%s2 + $0x28] sm:$0xf]
  %v51 = vld [vmem:[%s2 + $0x2c] sm:$0xf]
  %v52 = vld [vmem:[%s2 + $0x30] sm:$0xf]
  %v53 = vld [vmem:[%s2 + $0x34] sm:$0xf]
  %v54 = vld [vmem:[%s2 + $0x38] sm:$0xf]
  %v55 = vld [vmem:[%s2 + $0x3c] sm:$0xf]
  %v56 = vld [vmem:[%s3] sm:$0x1]
  %v57 = vld [vmem:[%s0] sm:$0xf]
  %v58 = vld [vmem:[%s0 + $0x4] sm:$0xf]
  %v59 = vld [vmem:[%s0 + $0x8] sm:$0xf]
  %v60 = vld [vmem:[%s0 + $0xc] sm:$0xf]
  %v61 = vld [vmem:[%s0 + $0x10] sm:$0xf]
  %v62 = vld [vmem:[%s0 + $0x14] sm:$0xf]
  %v64 = vlaneseq
  %v65 = vshrl.u32 %v64, 7
  %v66 = vsub.s32 0, %v65
  %v67 = vrot.slane %v56, %v66
  %v75 = vunpack.c.l.b16 %v57
  %v76 = vunpack.c.l.b16 %v58
  %v77 = vunpack.c.l.b16 %v59
  %v78 = vunpack.c.l.b16 %v60
  %v79 = vunpack.c.l.b16 %v61
  %v80 = vunpack.c.l.b16 %v62
  %v81 = vpack.c.b16 %v76, %v75
  %v82 = vpack.c.b16 %v78, %v77
  %v83 = vpack.c.b16 %v80, %v79
  %v103 = vunpack.c.l.b16 %v40
  %v104 = vunpack.c.l.b16 %v41
  %v105 = vunpack.c.l.b16 %v42
  %v106 = vunpack.c.l.b16 %v43
  %v107 = vunpack.c.l.b16 %v44
  %v108 = vunpack.c.l.b16 %v45
  %v109 = vunpack.c.l.b16 %v46
  %v110 = vunpack.c.l.b16 %v47
  %v111 = vunpack.c.l.b16 %v48
  %v112 = vunpack.c.l.b16 %v49
  %v113 = vunpack.c.l.b16 %v50
  %v114 = vunpack.c.l.b16 %v51
  %v115 = vunpack.c.l.b16 %v52
  %v116 = vunpack.c.l.b16 %v53
  %v117 = vunpack.c.l.b16 %v54
  %v118 = vunpack.c.l.b16 %v55
  %v119 = vpack.c.b16 %v104, %v103
  %v120 = vpack.c.b16 %v106, %v105
  %v121 = vpack.c.b16 %v108, %v107
  %v122 = vpack.c.b16 %v110, %v109
  %v123 = vpack.c.b16 %v112, %v111
  %v124 = vpack.c.b16 %v114, %v113
  %v125 = vpack.c.b16 %v116, %v115
  %v126 = vpack.c.b16 %v118, %v117
  %135 = vmatprep.subr.bf16.mxu0 0
  %136 = vmatpush1.bf16.msra.mxu0 %v119
  %137 = vmatprep.subr.bf16.mxu0 0
  %138 = vmatpush1.bf16.msra.mxu0 %v120
  %139 = vmatprep.subr.bf16.mxu0 0
  %140 = vmatpush1.bf16.msra.mxu0 %v121
  %141 = vmatprep.subr.bf16.mxu0 0
  %142 = vmatpush1.bf16.msra.mxu0 %v122
  %143 = vmatprep.subr.bf16.mxu0 0
  %144 = vmatpush1.bf16.msra.mxu0 %v123
  %145 = vmatprep.subr.bf16.mxu0 0
  %146 = vmatpush1.bf16.msra.mxu0 %v124
  %147 = vmatprep.subr.bf16.mxu0 0
  %148 = vmatpush1.bf16.msra.mxu0 %v125
  %149 = vmatprep.subr.bf16.mxu0 0
  %150 = vmatpush1.bf16.msra.mxu0 %v126
  %151 = vmatprep.subr.bf16.mxu0 0
  %152 = vmatpush1.bf16.msra.mxu0 0
  %153 = vmatprep.subr.bf16.mxu0 0
  %154 = vmatpush1.bf16.msra.mxu0 0
  %155 = vmatprep.subr.bf16.mxu0 0
  %156 = vmatpush1.bf16.msra.mxu0 0
  %157 = vmatprep.subr.bf16.mxu0 0
  %158 = vmatpush1.bf16.msra.mxu0 0
  %159 = vmatprep.subr.bf16.mxu0 0
  %160 = vmatpush1.bf16.msra.mxu0 0
  %161 = vmatprep.subr.bf16.mxu0 0
  %162 = vmatpush1.bf16.msra.mxu0 0
  %163 = vmatprep.subr.bf16.mxu0 0
  %164 = vmatpush1.bf16.msra.mxu0 0
  %165 = vmatprep.subr.bf16.mxu0 0
  %166 = vmatpush1.bf16.msra.mxu0 0
  %167 = vmatprep.mubr.bf16.mxu0 0
  %168 = vmatmul.mubr.bf16.gmra.mrb[0].mxu0 %v81
  %v169 = vpop.f32.mrb[0].mxu0
  %v170 = vadd.f32 %v67, %v169
  %v171 = vpop.f32.mrb[0].mxu0
  %v172 = vpop.f32.mrb[0].mxu0
  %v173 = vadd.f32 %v67, %v172
  %v174 = vpop.f32.mrb[0].mxu0
  %175 = vmatprep.mubr.bf16.mxu0 0
  %176 = vmatmul.mubr.bf16.gmra.mrb[0].mxu0 %v82
  %v177 = vpop.f32.mrb[0].mxu0
  %v178 = vadd.f32 %v67, %v177
  %v179 = vpop.f32.mrb[0].mxu0
  %v180 = vpop.f32.mrb[0].mxu0
  %v181 = vadd.f32 %v67, %v180
  %v182 = vpop.f32.mrb[0].mxu0
  %183 = vmatprep.mubr.bf16.mxu0 0
  %184 = vmatmul.mubr.bf16.gmra.mrb[0].mxu0 %v83
  %v185 = vpop.f32.mrb[0].mxu0
  %v186 = vadd.f32 %v67, %v185
  %v187 = vpop.f32.mrb[0].mxu0
  %v188 = vpop.f32.mrb[0].mxu0
  %v189 = vadd.f32 %v67, %v188
  %v190 = vpop.f32.mrb[0].mxu0
  %191 = vdwg.mxu0
  %192 = vst [vmem:[#allocation4] sm:$0xff] %v170
  %193 = vst [vmem:[#allocation4 + $0x8] sm:$0xff] %v173
  %194 = vst [vmem:[#allocation4 + $0x10] sm:$0xff] %v178
  %195 = vst [vmem:[#allocation4 + $0x18] sm:$0xff] %v181
  %196 = vst [vmem:[#allocation4 + $0x20] sm:$0xff] %v186
  %197 = vst [vmem:[#allocation4 + $0x28] sm:$0xff] %v189
  %v198 = vld [vmem:[%s1] sm:$0xf]
  %v199 = vld [vmem:[%s1 + $0x4] sm:$0xf]
  %v200 = vld [vmem:[%s1 + $0x8] sm:$0xf]
  %v201 = vld [vmem:[%s1 + $0xc] sm:$0xf]
  %v202 = vld [vmem:[%s1 + $0x10] sm:$0xf]
  %v203 = vld [vmem:[%s1 + $0x14] sm:$0xf]
  %v210 = vunpack.c.l.b16 %v198
  %v211 = vunpack.c.l.b16 %v199
  %v212 = vunpack.c.l.b16 %v200
  %v213 = vunpack.c.l.b16 %v201
  %v214 = vunpack.c.l.b16 %v202
  %v215 = vunpack.c.l.b16 %v203
  %v216 = vpack.c.b16 %v211, %v210
  %v217 = vpack.c.b16 %v213, %v212
  %v218 = vpack.c.b16 %v215, %v214
  %222 = vmatprep.subr.bf16.mxu0 0
  %223 = vmatpush1.bf16.msra.mxu0 %v119
  %224 = vmatprep.subr.bf16.mxu0 0
  %225 = vmatpush1.bf16.msra.mxu0 %v120
  %226 = vmatprep.subr.bf16.mxu0 0
  %227 = vmatpush1.bf16.msra.mxu0 %v121
  %228 = vmatprep.subr.bf16.mxu0 0
  %229 = vmatpush1.bf16.msra.mxu0 %v122
  %230 = vmatprep.subr.bf16.mxu0 0
  %231 = vmatpush1.bf16.msra.mxu0 %v123
  %232 = vmatprep.subr.bf16.mxu0 0
  %233 = vmatpush1.bf16.msra.mxu0 %v124
  %234 = vmatprep.subr.bf16.mxu0 0
  %235 = vmatpush1.bf16.msra.mxu0 %v125
  %236 = vmatprep.subr.bf16.mxu0 0
  %237 = vmatpush1.bf16.msra.mxu0 %v126
  %238 = vmatprep.subr.bf16.mxu0 0
  %239 = vmatpush1.bf16.msra.mxu0 0
  %240 = vmatprep.subr.bf16.mxu0 0
  %241 = vmatpush1.bf16.msra.mxu0 0
  %242 = vmatprep.subr.bf16.mxu0 0
  %243 = vmatpush1.bf16.msra.mxu0 0
  %244 = vmatprep.subr.bf16.mxu0 0
  %245 = vmatpush1.bf16.msra.mxu0 0
  %246 = vmatprep.subr.bf16.mxu0 0
  %247 = vmatpush1.bf16.msra.mxu0 0
  %248 = vmatprep.subr.bf16.mxu0 0
  %249 = vmatpush1.bf16.msra.mxu0 0
  %250 = vmatprep.subr.bf16.mxu0 0
  %251 = vmatpush1.bf16.msra.mxu0 0
  %252 = vmatprep.subr.bf16.mxu0 0
  %253 = vmatpush1.bf16.msra.mxu0 0
  %254 = vmatprep.mubr.bf16.mxu0 0
  %255 = vmatmul.mubr.bf16.gmra.mrb[0].mxu0 %v216
  %v256 = vpop.f32.mrb[0].mxu0
  %v257 = vadd.f32 %v67, %v256
  %v258 = vpop.f32.mrb[0].mxu0
  %v259 = vpop.f32.mrb[0].mxu0
  %v260 = vadd.f32 %v67, %v259
  %v261 = vpop.f32.mrb[0].mxu0
  %262 = vmatprep.mubr.bf16.mxu0 0
  %263 = vmatmul.mubr.bf16.gmra.mrb[0].mxu0 %v217
  %v264 = vpop.f32.mrb[0].mxu0
  %v265 = vadd.f32 %v67, %v264
  %v266 = vpop.f32.mrb[0].mxu0
  %v267 = vpop.f32.mrb[0].mxu0
  %v268 = vadd.f32 %v67, %v267
  %v269 = vpop.f32.mrb[0].mxu0
  %270 = vmatprep.mubr.bf16.mxu0 0
  %271 = vmatmul.mubr.bf16.gmra.mrb[0].mxu0 %v218
  %v272 = vpop.f32.mrb[0].mxu0
  %v273 = vadd.f32 %v67, %v272
  %v274 = vpop.f32.mrb[0].mxu0
  %v275 = vpop.f32.mrb[0].mxu0
  %v276 = vadd.f32 %v67, %v275
  %v277 = vpop.f32.mrb[0].mxu0
  %278 = vdwg.mxu0
  %279 = vst [vmem:[#allocation5] sm:$0xff] %v257
  %280 = vst [vmem:[#allocation5 + $0x8] sm:$0xff] %v260
  %281 = vst [vmem:[#allocation5 + $0x10] sm:$0xff] %v265
  %282 = vst [vmem:[#allocation5 + $0x18] sm:$0xff] %v268
  %283 = vst [vmem:[#allocation5 + $0x20] sm:$0xff] %v273
  %284 = vst [vmem:[#allocation5 + $0x28] sm:$0xff] %v276
  %v285 = vld [vmem:[%s4] sm:$0xf]
  %v286 = vld [vmem:[%s4 + $0x4] sm:$0xf]
  %v287 = vld [vmem:[%s4 + $0x8] sm:$0xf]
  %v288 = vld [vmem:[%s4 + $0xc] sm:$0xf]
  %v289 = vld [vmem:[#allocation2] sm:$0xff]
  %v290 = vld [vmem:[#allocation3] sm:$0xff]
  %v291 = vpack.c.bf16 %v289, %v289
  %v296 = vunpack.c.l.b16 %v285
  %v297 = vunpack.c.l.b16 %v286
  %v298 = vunpack.c.l.b16 %v287
  %v299 = vunpack.c.l.b16 %v288
  %v300 = vpack.c.b16 %v297, %v296
  %v301 = vpack.c.b16 %v299, %v298
  %vm304 = vcmask 261120
  %v306 = vsel %vm304, %v291, 0
  %308 = vmatprep.subr.bf16.mxu0 0
  %309 = vmatpush1.bf16.msra.mxu0 %v300
  %310 = vmatprep.subr.bf16.mxu0 0
  %311 = vmatpush1.bf16.msra.mxu0 %v301
  %312 = vmatprep.subr.bf16.mxu0 0
  %313 = vmatpush1.bf16.msra.mxu0 0
  %314 = vmatprep.subr.bf16.mxu0 0
  %315 = vmatpush1.bf16.msra.mxu0 0
  %316 = vmatprep.subr.bf16.mxu0 0
  %317 = vmatpush1.bf16.msra.mxu0 0
  %318 = vmatprep.subr.bf16.mxu0 0
  %319 = vmatpush1.bf16.msra.mxu0 0
  %320 = vmatprep.subr.bf16.mxu0 0
  %321 = vmatpush1.bf16.msra.mxu0 0
  %322 = vmatprep.subr.bf16.mxu0 0
  %323 = vmatpush1.bf16.msra.mxu0 0
  %324 = vmatprep.subr.bf16.mxu0 0
  %325 = vmatpush1.bf16.msra.mxu0 0
  %326 = vmatprep.subr.bf16.mxu0 0
  %327 = vmatpush1.bf16.msra.mxu0 0
  %328 = vmatprep.subr.bf16.mxu0 0
  %329 = vmatpush1.bf16.msra.mxu0 0
  %330 = vmatprep.subr.bf16.mxu0 0
  %331 = vmatpush1.bf16.msra.mxu0 0
  %332 = vmatprep.subr.bf16.mxu0 0
  %333 = vmatpush1.bf16.msra.mxu0 0
  %334 = vmatprep.subr.bf16.mxu0 0
  %335 = vmatpush1.bf16.msra.mxu0 0
  %336 = vmatprep.subr.bf16.mxu0 0
  %337 = vmatpush1.bf16.msra.mxu0 0
  %338 = vmatprep.subr.bf16.mxu0 0
  %339 = vmatpush1.bf16.msra.mxu0 0
  %340 = vmatprep.mubr.bf16.mxu0 0
  %341 = vmatmul.mubr.bf16.gmra.mrb[0].mxu0 %v306
  %v342 = vpop.f32.mrb[0].mxu0
  %v343 = vadd.f32 0.0, %v342
  %v344 = vpop.f32.mrb[0].mxu0
  %v345 = vpop.f32.mrb[0].mxu0
  %v346 = vpop.f32.mrb[0].mxu0
  %347 = vdwg.mxu0
  %v348 = vld [vmem:[#allocation4] sm:$0xff]
  %v349 = vadd.f32 %v348, %v343
  %v350 = vxor.u32 %v349, 2147483648
  %v351 = vmul.f32 %v350, 1.442695
  %v352 = vpow.pop %v351
  %v353 = vadd.f32 %v352, 1.0
  %v354 = vrcp.pop %v353
  %v355 = vmul.f32 1.0, %v354
  %v356 = vtanh.pop %v349
  %358 = vrot.lane.b32.xlu0 %v290, 32
  %v359 = vpop.permute.xlu0 %358
  %v361 = vmul.f32 %v355, %v359
  %363 = vrot.lane.b32.xlu0 %v356, 32
  %v364 = vpop.permute.xlu0 %363
  %v366 = vmul.f32 %v355, %v364
  %368 = vrot.lane.b32.xlu0 %v366, 32
  %v369 = vpop.permute.xlu0 %368
  %v371 = vadd.f32 %v361, %v369
  %v372 = vtanh.pop %v371
  %374 = vrot.lane.b32.xlu0 %v372, 32
  %v375 = vpop.permute.xlu0 %374
  %v377 = vmul.f32 %v355, %v375
  %379 = vrot.lane.b32.xlu0 %v377, 64
  %v380 = vpop.permute.xlu0 %379
  %383 = vrot.lane.b32.xlu0 %v289, 32
  %v384 = vpop.permute.xlu0 %383
  %386 = vrot.lane.b32.xlu0 %v290, 64
  %v387 = vpop.permute.xlu0 %386
  %390 = vrot.lane.b32.xlu0 %v371, 64
  %v391 = vpop.permute.xlu0 %390
  %v393 = vsel %vm304, %v380, %v384
  %vm394 = vcmask 523264
  %v395 = vsel %vm394, %v393, %v387
  %vm396 = vcmask 785408
  %v397 = vsel %vm396, %v395, %v391
  %398 = vst [vmem:[#allocation6] sm:$0xff] %v397
  %399 = vst.msk [vmem:[#allocation2] sm:$0xff] %vm304, %v380
  %400 = vrot.lane.b32.xlu0 %v371, 96
  %v401 = vpop.permute.xlu0 %400
  %403 = vst.msk [vmem:[#allocation3] sm:$0xff] %vm304, %v401
  %v404 = vld [vmem:[#allocation2] sm:$0xff]
  %v405 = vld [vmem:[#allocation3] sm:$0xff]
  %v406 = vpack.c.bf16 %v404, %v404
  %v408 = vsel %vm304, %v406, 0
  %410 = vmatprep.subr.bf16.mxu0 0
  %411 = vmatpush1.bf16.msra.mxu0 %v300
  %412 = vmatprep.subr.bf16.mxu0 0
  %413 = vmatpush1.bf16.msra.mxu0 %v301
  %414 = vmatprep.subr.bf16.mxu0 0
  %415 = vmatpush1.bf16.msra.mxu0 0
  %416 = vmatprep.subr.bf16.mxu0 0
  %417 = vmatpush1.bf16.msra.mxu0 0
  %418 = vmatprep.subr.bf16.mxu0 0
  %419 = vmatpush1.bf16.msra.mxu0 0
  %420 = vmatprep.subr.bf16.mxu0 0
  %421 = vmatpush1.bf16.msra.mxu0 0
  %422 = vmatprep.subr.bf16.mxu0 0
  %423 = vmatpush1.bf16.msra.mxu0 0
  %424 = vmatprep.subr.bf16.mxu0 0
  %425 = vmatpush1.bf16.msra.mxu0 0
  %426 = vmatprep.subr.bf16.mxu0 0
  %427 = vmatpush1.bf16.msra.mxu0 0
  %428 = vmatprep.subr.bf16.mxu0 0
  %429 = vmatpush1.bf16.msra.mxu0 0
  %430 = vmatprep.subr.bf16.mxu0 0
  %431 = vmatpush1.bf16.msra.mxu0 0
  %432 = vmatprep.subr.bf16.mxu0 0
  %433 = vmatpush1.bf16.msra.mxu0 0
  %434 = vmatprep.subr.bf16.mxu0 0
  %435 = vmatpush1.bf16.msra.mxu0 0
  %436 = vmatprep.subr.bf16.mxu0 0
  %437 = vmatpush1.bf16.msra.mxu0 0
  %438 = vmatprep.subr.bf16.mxu0 0
  %439 = vmatpush1.bf16.msra.mxu0 0
  %440 = vmatprep.subr.bf16.mxu0 0
  %441 = vmatpush1.bf16.msra.mxu0 0
  %442 = vmatprep.mubr.bf16.mxu0 0
  %443 = vmatmul.mubr.bf16.gmra.mrb[0].mxu0 %v408
  %v444 = vpop.f32.mrb[0].mxu0
  %v445 = vadd.f32 0.0, %v444
  %v446 = vpop.f32.mrb[0].mxu0
  %v447 = vpop.f32.mrb[0].mxu0
  %v448 = vpop.f32.mrb[0].mxu0
  %449 = vdwg.mxu0
  %s450 = scalar_lea.vmem [#allocation4], 8
  %v451 = vld [vmem:[%s450] sm:$0xff]
  %v452 = vadd.f32 %v451, %v445
  %v453 = vxor.u32 %v452, 2147483648
  %v454 = vmul.f32 %v453, 1.442695
  %v455 = vpow.pop %v454
  %v456 = vadd.f32 %v455, 1.0
  %v457 = vrcp.pop %v456
  %v458 = vmul.f32 1.0, %v457
  %v459 = vtanh.pop %v452
  %461 = vrot.lane.b32.xlu0 %v405, 32
  %v462 = vpop.permute.xlu0 %461
  %v464 = vmul.f32 %v458, %v462
  %466 = vrot.lane.b32.xlu0 %v459, 32
  %v467 = vpop.permute.xlu0 %466
  %v469 = vmul.f32 %v458, %v467
  %471 = vrot.lane.b32.xlu0 %v469, 32
  %v472 = vpop.permute.xlu0 %471
  %v474 = vadd.f32 %v464, %v472
  %v475 = vtanh.pop %v474
  %477 = vrot.lane.b32.xlu0 %v475, 32
  %v478 = vpop.permute.xlu0 %477
  %v480 = vmul.f32 %v458, %v478
  %482 = vrot.lane.b32.xlu0 %v480, 64
  %v483 = vpop.permute.xlu0 %482
  %486 = vrot.lane.b32.xlu0 %v404, 32
  %v487 = vpop.permute.xlu0 %486
  %489 = vrot.lane.b32.xlu0 %v405, 64
  %v490 = vpop.permute.xlu0 %489
  %493 = vrot.lane.b32.xlu0 %v474, 64
  %v494 = vpop.permute.xlu0 %493
  %v496 = vsel %vm304, %v483, %v487
  %v497 = vsel %vm394, %v496, %v490
  %v498 = vsel %vm396, %v497, %v494
  %s499 = scalar_lea.vmem [#allocation6], 8
  %500 = vst [vmem:[%s499] sm:$0xff] %v498
  %501 = vst.msk [vmem:[#allocation2] sm:$0xff] %vm304, %v483
  %502 = vrot.lane.b32.xlu0 %v474, 96
  %v503 = vpop.permute.xlu0 %502
  %505 = vst.msk [vmem:[#allocation3] sm:$0xff] %vm304, %v503
  %v506 = vld [vmem:[#allocation2] sm:$0xff]
  %v507 = vld [vmem:[#allocation3] sm:$0xff]
  %v508 = vpack.c.bf16 %v506, %v506
  %v510 = vsel %vm304, %v508, 0
  %512 = vmatprep.subr.bf16.mxu0 0
  %513 = vmatpush1.bf16.msra.mxu0 %v300
  %514 = vmatprep.subr.bf16.mxu0 0
  %515 = vmatpush1.bf16.msra.mxu0 %v301
  %516 = vmatprep.subr.bf16.mxu0 0
  %517 = vmatpush1.bf16.msra.mxu0 0
  %518 = vmatprep.subr.bf16.mxu0 0
  %519 = vmatpush1.bf16.msra.mxu0 0
  %520 = vmatprep.subr.bf16.mxu0 0
  %521 = vmatpush1.bf16.msra.mxu0 0
  %522 = vmatprep.subr.bf16.mxu0 0
  %523 = vmatpush1.bf16.msra.mxu0 0
  %524 = vmatprep.subr.bf16.mxu0 0
  %525 = vmatpush1.bf16.msra.mxu0 0
  %526 = vmatprep.subr.bf16.mxu0 0
  %527 = vmatpush1.bf16.msra.mxu0 0
  %528 = vmatprep.subr.bf16.mxu0 0
  %529 = vmatpush1.bf16.msra.mxu0 0
  %530 = vmatprep.subr.bf16.mxu0 0
  %531 = vmatpush1.bf16.msra.mxu0 0
  %532 = vmatprep.subr.bf16.mxu0 0
  %533 = vmatpush1.bf16.msra.mxu0 0
  %534 = vmatprep.subr.bf16.mxu0 0
  %535 = vmatpush1.bf16.msra.mxu0 0
  %536 = vmatprep.subr.bf16.mxu0 0
  %537 = vmatpush1.bf16.msra.mxu0 0
  %538 = vmatprep.subr.bf16.mxu0 0
  %539 = vmatpush1.bf16.msra.mxu0 0
  %540 = vmatprep.subr.bf16.mxu0 0
  %541 = vmatpush1.bf16.msra.mxu0 0
  %542 = vmatprep.subr.bf16.mxu0 0
  %543 = vmatpush1.bf16.msra.mxu0 0
  %544 = vmatprep.mubr.bf16.mxu0 0
  %545 = vmatmul.mubr.bf16.gmra.mrb[0].mxu0 %v510
  %v546 = vpop.f32.mrb[0].mxu0
  %v547 = vadd.f32 0.0, %v546
  %v548 = vpop.f32.mrb[0].mxu0
  %v549 = vpop.f32.mrb[0].mxu0
  %v550 = vpop.f32.mrb[0].mxu0
  %551 = vdwg.mxu0
  %s552 = scalar_lea.vmem [#allocation4], 16
  %v553 = vld [vmem:[%s552] sm:$0xff]
  %v554 = vadd.f32 %v553, %v547
  %v555 = vxor.u32 %v554, 2147483648
  %v556 = vmul.f32 %v555, 1.442695
  %v557 = vpow.pop %v556
  %v558 = vadd.f32 %v557, 1.0
  %v559 = vrcp.pop %v558
  %v560 = vmul.f32 1.0, %v559
  %v561 = vtanh.pop %v554
  %563 = vrot.lane.b32.xlu0 %v507, 32
  %v564 = vpop.permute.xlu0 %563
  %v566 = vmul.f32 %v560, %v564
  %568 = vrot.lane.b32.xlu0 %v561, 32
  %v569 = vpop.permute.xlu0 %568
  %v571 = vmul.f32 %v560, %v569
  %573 = vrot.lane.b32.xlu0 %v571, 32
  %v574 = vpop.permute.xlu0 %573
  %v576 = vadd.f32 %v566, %v574
  %v577 = vtanh.pop %v576
  %579 = vrot.lane.b32.xlu0 %v577, 32
  %v580 = vpop.permute.xlu0 %579
  %v582 = vmul.f32 %v560, %v580
  %584 = vrot.lane.b32.xlu0 %v582, 64
  %v585 = vpop.permute.xlu0 %584
  %588 = vrot.lane.b32.xlu0 %v506, 32
  %v589 = vpop.permute.xlu0 %588
  %591 = vrot.lane.b32.xlu0 %v507, 64
  %v592 = vpop.permute.xlu0 %591
  %595 = vrot.lane.b32.xlu0 %v576, 64
  %v596 = vpop.permute.xlu0 %595
  %v598 = vsel %vm304, %v585, %v589
  %v599 = vsel %vm394, %v598, %v592
  %v600 = vsel %vm396, %v599, %v596
  %s601 = scalar_lea.vmem [#allocation6], 16
  %602 = vst [vmem:[%s601] sm:$0xff] %v600
  %603 = vst.msk [vmem:[#allocation2] sm:$0xff] %vm304, %v585
  %604 = vrot.lane.b32.xlu0 %v576, 96
  %v605 = vpop.permute.xlu0 %604
  %607 = vst.msk [vmem:[#allocation3] sm:$0xff] %vm304, %v605
  %v608 = vld [vmem:[#allocation2] sm:$0xff]
  %v609 = vld [vmem:[#allocation3] sm:$0xff]
  %v610 = vpack.c.bf16 %v608, %v608
  %v612 = vsel %vm304, %v610, 0
  %614 = vmatprep.subr.bf16.mxu0 0
  %615 = vmatpush1.bf16.msra.mxu0 %v300
  %616 = vmatprep.subr.bf16.mxu0 0
  %617 = vmatpush1.bf16.msra.mxu0 %v301
  %618 = vmatprep.subr.bf16.mxu0 0
  %619 = vmatpush1.bf16.msra.mxu0 0
  %620 = vmatprep.subr.bf16.mxu0 0
  %621 = vmatpush1.bf16.msra.mxu0 0
  %622 = vmatprep.subr.bf16.mxu0 0
  %623 = vmatpush1.bf16.msra.mxu0 0
  %624 = vmatprep.subr.bf16.mxu0 0
  %625 = vmatpush1.bf16.msra.mxu0 0
  %626 = vmatprep.subr.bf16.mxu0 0
  %627 = vmatpush1.bf16.msra.mxu0 0
  %628 = vmatprep.subr.bf16.mxu0 0
  %629 = vmatpush1.bf16.msra.mxu0 0
  %630 = vmatprep.subr.bf16.mxu0 0
  %631 = vmatpush1.bf16.msra.mxu0 0
  %632 = vmatprep.subr.bf16.mxu0 0
  %633 = vmatpush1.bf16.msra.mxu0 0
  %634 = vmatprep.subr.bf16.mxu0 0
  %635 = vmatpush1.bf16.msra.mxu0 0
  %636 = vmatprep.subr.bf16.mxu0 0
  %637 = vmatpush1.bf16.msra.mxu0 0
  %638 = vmatprep.subr.bf16.mxu0 0
  %639 = vmatpush1.bf16.msra.mxu0 0
  %640 = vmatprep.subr.bf16.mxu0 0
  %641 = vmatpush1.bf16.msra.mxu0 0
  %642 = vmatprep.subr.bf16.mxu0 0
  %643 = vmatpush1.bf16.msra.mxu0 0
  %644 = vmatprep.subr.bf16.mxu0 0
  %645 = vmatpush1.bf16.msra.mxu0 0
  %646 = vmatprep.mubr.bf16.mxu0 0
  %647 = vmatmul.mubr.bf16.gmra.mrb[0].mxu0 %v612
  %v648 = vpop.f32.mrb[0].mxu0
  %v649 = vadd.f32 0.0, %v648
  %v650 = vpop.f32.mrb[0].mxu0
  %v651 = vpop.f32.mrb[0].mxu0
  %v652 = vpop.f32.mrb[0].mxu0
  %653 = vdwg.mxu0
  %s654 = scalar_lea.vmem [#allocation4], 24
  %v655 = vld [vmem:[%s654] sm:$0xff]
  %v656 = vadd.f32 %v655, %v649
  %v657 = vxor.u32 %v656, 2147483648
  %v658 = vmul.f32 %v657, 1.442695
  %v659 = vpow.pop %v658
  %v660 = vadd.f32 %v659, 1.0
  %v661 = vrcp.pop %v660
  %v662 = vmul.f32 1.0, %v661
  %v663 = vtanh.pop %v656
  %665 = vrot.lane.b32.xlu0 %v609, 32
  %v666 = vpop.permute.xlu0 %665
  %v668 = vmul.f32 %v662, %v666
  %670 = vrot.lane.b32.xlu0 %v663, 32
  %v671 = vpop.permute.xlu0 %670
  %v673 = vmul.f32 %v662, %v671
  %675 = vrot.lane.b32.xlu0 %v673, 32
  %v676 = vpop.permute.xlu0 %675
  %v678 = vadd.f32 %v668, %v676
  %v679 = vtanh.pop %v678
  %681 = vrot.lane.b32.xlu0 %v679, 32
  %v682 = vpop.permute.xlu0 %681
  %v684 = vmul.f32 %v662, %v682
  %686 = vrot.lane.b32.xlu0 %v684, 64
  %v687 = vpop.permute.xlu0 %686
  %690 = vrot.lane.b32.xlu0 %v608, 32
  %v691 = vpop.permute.xlu0 %690
  %693 = vrot.lane.b32.xlu0 %v609, 64
  %v694 = vpop.permute.xlu0 %693
  %697 = vrot.lane.b32.xlu0 %v678, 64
  %v698 = vpop.permute.xlu0 %697
  %v700 = vsel %vm304, %v687, %v691
  %v701 = vsel %vm394, %v700, %v694
  %v702 = vsel %vm396, %v701, %v698
  %s703 = scalar_lea.vmem [#allocation6], 24
  %704 = vst [vmem:[%s703] sm:$0xff] %v702
  %705 = vst.msk [vmem:[#allocation2] sm:$0xff] %vm304, %v687
  %706 = vrot.lane.b32.xlu0 %v678, 96
  %v707 = vpop.permute.xlu0 %706
  %709 = vst.msk [vmem:[#allocation3] sm:$0xff] %vm304, %v707
  %v710 = vld [vmem:[#allocation2] sm:$0xff]
  %v711 = vld [vmem:[#allocation3] sm:$0xff]
  %v712 = vpack.c.bf16 %v710, %v710
  %v714 = vsel %vm304, %v712, 0
  %716 = vmatprep.subr.bf16.mxu0 0
  %717 = vmatpush1.bf16.msra.mxu0 %v300
  %718 = vmatprep.subr.bf16.mxu0 0
  %719 = vmatpush1.bf16.msra.mxu0 %v301
  %720 = vmatprep.subr.bf16.mxu0 0
  %721 = vmatpush1.bf16.msra.mxu0 0
  %722 = vmatprep.subr.bf16.mxu0 0
  %723 = vmatpush1.bf16.msra.mxu0 0
  %724 = vmatprep.subr.bf16.mxu0 0
  %725 = vmatpush1.bf16.msra.mxu0 0
  %726 = vmatprep.subr.bf16.mxu0 0
  %727 = vmatpush1.bf16.msra.mxu0 0
  %728 = vmatprep.subr.bf16.mxu0 0
  %729 = vmatpush1.bf16.msra.mxu0 0
  %730 = vmatprep.subr.bf16.mxu0 0
  %731 = vmatpush1.bf16.msra.mxu0 0
  %732 = vmatprep.subr.bf16.mxu0 0
  %733 = vmatpush1.bf16.msra.mxu0 0
  %734 = vmatprep.subr.bf16.mxu0 0
  %735 = vmatpush1.bf16.msra.mxu0 0
  %736 = vmatprep.subr.bf16.mxu0 0
  %737 = vmatpush1.bf16.msra.mxu0 0
  %738 = vmatprep.subr.bf16.mxu0 0
  %739 = vmatpush1.bf16.msra.mxu0 0
  %740 = vmatprep.subr.bf16.mxu0 0
  %741 = vmatpush1.bf16.msra.mxu0 0
  %742 = vmatprep.subr.bf16.mxu0 0
  %743 = vmatpush1.bf16.msra.mxu0 0
  %744 = vmatprep.subr.bf16.mxu0 0
  %745 = vmatpush1.bf16.msra.mxu0 0
  %746 = vmatprep.subr.bf16.mxu0 0
  %747 = vmatpush1.bf16.msra.mxu0 0
  %748 = vmatprep.mubr.bf16.mxu0 0
  %749 = vmatmul.mubr.bf16.gmra.mrb[0].mxu0 %v714
  %v750 = vpop.f32.mrb[0].mxu0
  %v751 = vadd.f32 0.0, %v750
  %v752 = vpop.f32.mrb[0].mxu0
  %v753 = vpop.f32.mrb[0].mxu0
  %v754 = vpop.f32.mrb[0].mxu0
  %755 = vdwg.mxu0
  %s756 = scalar_lea.vmem [#allocation4], 32
  %v757 = vld [vmem:[%s756] sm:$0xff]
  %v758 = vadd.f32 %v757, %v751
  %v759 = vxor.u32 %v758, 2147483648
  %v760 = vmul.f32 %v759, 1.442695
  %v761 = vpow.pop %v760
  %v762 = vadd.f32 %v761, 1.0
  %v763 = vrcp.pop %v762
  %v764 = vmul.f32 1.0, %v763
  %v765 = vtanh.pop %v758
  %767 = vrot.lane.b32.xlu0 %v711, 32
  %v768 = vpop.permute.xlu0 %767
  %v770 = vmul.f32 %v764, %v768
  %772 = vrot.lane.b32.xlu0 %v765, 32
  %v773 = vpop.permute.xlu0 %772
  %v775 = vmul.f32 %v764, %v773
  %777 = vrot.lane.b32.xlu0 %v775, 32
  %v778 = vpop.permute.xlu0 %777
  %v780 = vadd.f32 %v770, %v778
  %v781 = vtanh.pop %v780
  %783 = vrot.lane.b32.xlu0 %v781, 32
  %v784 = vpop.permute.xlu0 %783
  %v786 = vmul.f32 %v764, %v784
  %788 = vrot.lane.b32.xlu0 %v786, 64
  %v789 = vpop.permute.xlu0 %788
  %792 = vrot.lane.b32.xlu0 %v710, 32
  %v793 = vpop.permute.xlu0 %792
  %795 = vrot.lane.b32.xlu0 %v711, 64
  %v796 = vpop.permute.xlu0 %795
  %799 = vrot.lane.b32.xlu0 %v780, 64
  %v800 = vpop.permute.xlu0 %799
  %v802 = vsel %vm304, %v789, %v793
  %v803 = vsel %vm394, %v802, %v796
  %v804 = vsel %vm396, %v803, %v800
  %s805 = scalar_lea.vmem [#allocation6], 32
  %806 = vst [vmem:[%s805] sm:$0xff] %v804
  %807 = vst.msk [vmem:[#allocation2] sm:$0xff] %vm304, %v789
  %808 = vrot.lane.b32.xlu0 %v780, 96
  %v809 = vpop.permute.xlu0 %808
  %811 = vst.msk [vmem:[#allocation3] sm:$0xff] %vm304, %v809
  %v812 = vld [vmem:[#allocation2] sm:$0xff]
  %v813 = vld [vmem:[#allocation3] sm:$0xff]
  %v814 = vpack.c.bf16 %v812, %v812
  %v816 = vsel %vm304, %v814, 0
  %818 = vmatprep.subr.bf16.mxu0 0
  %819 = vmatpush1.bf16.msra.mxu0 %v300
  %820 = vmatprep.subr.bf16.mxu0 0
  %821 = vmatpush1.bf16.msra.mxu0 %v301
  %822 = vmatprep.subr.bf16.mxu0 0
  %823 = vmatpush1.bf16.msra.mxu0 0
  %824 = vmatprep.subr.bf16.mxu0 0
  %825 = vmatpush1.bf16.msra.mxu0 0
  %826 = vmatprep.subr.bf16.mxu0 0
  %827 = vmatpush1.bf16.msra.mxu0 0
  %828 = vmatprep.subr.bf16.mxu0 0
  %829 = vmatpush1.bf16.msra.mxu0 0
  %830 = vmatprep.subr.bf16.mxu0 0
  %831 = vmatpush1.bf16.msra.mxu0 0
  %832 = vmatprep.subr.bf16.mxu0 0
  %833 = vmatpush1.bf16.msra.mxu0 0
  %834 = vmatprep.subr.bf16.mxu0 0
  %835 = vmatpush1.bf16.msra.mxu0 0
  %836 = vmatprep.subr.bf16.mxu0 0
  %837 = vmatpush1.bf16.msra.mxu0 0
  %838 = vmatprep.subr.bf16.mxu0 0
  %839 = vmatpush1.bf16.msra.mxu0 0
  %840 = vmatprep.subr.bf16.mxu0 0
  %841 = vmatpush1.bf16.msra.mxu0 0
  %842 = vmatprep.subr.bf16.mxu0 0
  %843 = vmatpush1.bf16.msra.mxu0 0
  %844 = vmatprep.subr.bf16.mxu0 0
  %845 = vmatpush1.bf16.msra.mxu0 0
  %846 = vmatprep.subr.bf16.mxu0 0
  %847 = vmatpush1.bf16.msra.mxu0 0
  %848 = vmatprep.subr.bf16.mxu0 0
  %849 = vmatpush1.bf16.msra.mxu0 0
  %850 = vmatprep.mubr.bf16.mxu0 0
  %851 = vmatmul.mubr.bf16.gmra.mrb[0].mxu0 %v816
  %v852 = vpop.f32.mrb[0].mxu0
  %v853 = vadd.f32 0.0, %v852
  %v854 = vpop.f32.mrb[0].mxu0
  %v855 = vpop.f32.mrb[0].mxu0
  %v856 = vpop.f32.mrb[0].mxu0
  %857 = vdwg.mxu0
  %s858 = scalar_lea.vmem [#allocation4], 40
  %v859 = vld [vmem:[%s858] sm:$0xff]
  %v860 = vadd.f32 %v859, %v853
  %v861 = vxor.u32 %v860, 2147483648
  %v862 = vmul.f32 %v861, 1.442695
  %v863 = vpow.pop %v862
  %v864 = vadd.f32 %v863, 1.0
  %v865 = vrcp.pop %v864
  %v866 = vmul.f32 1.0, %v865
  %v867 = vtanh.pop %v860
  %869 = vrot.lane.b32.xlu0 %v813, 32
  %v870 = vpop.permute.xlu0 %869
  %v872 = vmul.f32 %v866, %v870
  %874 = vrot.lane.b32.xlu0 %v867, 32
  %v875 = vpop.permute.xlu0 %874
  %v877 = vmul.f32 %v866, %v875
  %879 = vrot.lane.b32.xlu0 %v877, 32
  %v880 = vpop.permute.xlu0 %879
  %v882 = vadd.f32 %v872, %v880
  %v883 = vtanh.pop %v882
  %885 = vrot.lane.b32.xlu0 %v883, 32
  %v886 = vpop.permute.xlu0 %885
  %v888 = vmul.f32 %v866, %v886
  %890 = vrot.lane.b32.xlu0 %v888, 64
  %v891 = vpop.permute.xlu0 %890
  %894 = vrot.lane.b32.xlu0 %v812, 32
  %v895 = vpop.permute.xlu0 %894
  %897 = vrot.lane.b32.xlu0 %v813, 64
  %v898 = vpop.permute.xlu0 %897
  %901 = vrot.lane.b32.xlu0 %v882, 64
  %v902 = vpop.permute.xlu0 %901
  %v904 = vsel %vm304, %v891, %v895
  %v905 = vsel %vm394, %v904, %v898
  %v906 = vsel %vm396, %v905, %v902
  %s907 = scalar_lea.vmem [#allocation6], 40
  %908 = vst [vmem:[%s907] sm:$0xff] %v906
  %909 = vst.msk [vmem:[#allocation2] sm:$0xff] %vm304, %v891
  %910 = vrot.lane.b32.xlu0 %v882, 96
  %v911 = vpop.permute.xlu0 %910
  %913 = vst.msk [vmem:[#allocation3] sm:$0xff] %vm304, %v911
  %v914 = vld [vmem:[#allocation6] sm:$0xff]
  %v915 = vld [vmem:[#allocation6 + $0x8] sm:$0xff]
  %v916 = vld [vmem:[#allocation6 + $0x10] sm:$0xff]
  %v917 = vld [vmem:[#allocation6 + $0x18] sm:$0xff]
  %v918 = vld [vmem:[#allocation6 + $0x20] sm:$0xff]
  %v919 = vld [vmem:[#allocation6 + $0x28] sm:$0xff]
  %v920 = vpack.c.bf16 %v915, %v914
  %v921 = vpack.c.bf16 %v917, %v916
  %v922 = vpack.c.bf16 %v919, %v918
  %926 = vrot.lane.b32.xlu0 %v920, 96
  %v927 = vpop.permute.xlu0 %926
  %928 = vrot.lane.b32.xlu0 %v921, 96
  %v929 = vpop.permute.xlu0 %928
  %930 = vrot.lane.b32.xlu0 %v922, 96
  %v931 = vpop.permute.xlu0 %930
  %v933 = vsel %vm304, %v927, 0
  %v936 = vsel %vm304, %v929, 0
  %v939 = vsel %vm304, %v931, 0
  %941 = vmatprep.subr.bf16.mxu0 0
  %942 = vmatpush1.bf16.msra.mxu0 %v300
  %943 = vmatprep.subr.bf16.mxu0 0
  %944 = vmatpush1.bf16.msra.mxu0 %v301
  %945 = vmatprep.subr.bf16.mxu0 0
  %946 = vmatpush1.bf16.msra.mxu0 0
  %947 = vmatprep.subr.bf16.mxu0 0
  %948 = vmatpush1.bf16.msra.mxu0 0
  %949 = vmatprep.subr.bf16.mxu0 0
  %950 = vmatpush1.bf16.msra.mxu0 0
  %951 = vmatprep.subr.bf16.mxu0 0
  %952 = vmatpush1.bf16.msra.mxu0 0
  %953 = vmatprep.subr.bf16.mxu0 0
  %954 = vmatpush1.bf16.msra.mxu0 0
  %955 = vmatprep.subr.bf16.mxu0 0
  %956 = vmatpush1.bf16.msra.mxu0 0
  %957 = vmatprep.subr.bf16.mxu0 0
  %958 = vmatpush1.bf16.msra.mxu0 0
  %959 = vmatprep.subr.bf16.mxu0 0
  %960 = vmatpush1.bf16.msra.mxu0 0
  %961 = vmatprep.subr.bf16.mxu0 0
  %962 = vmatpush1.bf16.msra.mxu0 0
  %963 = vmatprep.subr.bf16.mxu0 0
  %964 = vmatpush1.bf16.msra.mxu0 0
  %965 = vmatprep.subr.bf16.mxu0 0
  %966 = vmatpush1.bf16.msra.mxu0 0
  %967 = vmatprep.subr.bf16.mxu0 0
  %968 = vmatpush1.bf16.msra.mxu0 0
  %969 = vmatprep.subr.bf16.mxu0 0
  %970 = vmatpush1.bf16.msra.mxu0 0
  %971 = vmatprep.subr.bf16.mxu0 0
  %972 = vmatpush1.bf16.msra.mxu0 0
  %973 = vmatprep.mubr.bf16.mxu0 0
  %974 = vmatmul.mubr.bf16.gmra.mrb[0].mxu0 %v933
  %v975 = vpop.f32.mrb[0].mxu0
  %v976 = vadd.f32 0.0, %v975
  %v977 = vpop.f32.mrb[0].mxu0
  %v978 = vpop.f32.mrb[0].mxu0
  %v979 = vadd.f32 0.0, %v978
  %v980 = vpop.f32.mrb[0].mxu0
  %981 = vmatprep.mubr.bf16.mxu0 0
  %982 = vmatmul.mubr.bf16.gmra.mrb[0].mxu0 %v936
  %v983 = vpop.f32.mrb[0].mxu0
  %v984 = vadd.f32 0.0, %v983
  %v985 = vpop.f32.mrb[0].mxu0
  %v986 = vpop.f32.mrb[0].mxu0
  %v987 = vadd.f32 0.0, %v986
  %v988 = vpop.f32.mrb[0].mxu0
  %989 = vmatprep.mubr.bf16.mxu0 0
  %990 = vmatmul.mubr.bf16.gmra.mrb[0].mxu0 %v939
  %v991 = vpop.f32.mrb[0].mxu0
  %v992 = vadd.f32 0.0, %v991
  %v993 = vpop.f32.mrb[0].mxu0
  %v994 = vpop.f32.mrb[0].mxu0
  %v995 = vadd.f32 0.0, %v994
  %v996 = vpop.f32.mrb[0].mxu0
  %997 = vdwg.mxu0
  %v998 = vld [vmem:[#allocation5] sm:$0xff]
  %v999 = vld [vmem:[#allocation5 + $0x8] sm:$0xff]
  %v1000 = vld [vmem:[#allocation5 + $0x10] sm:$0xff]
  %v1001 = vld [vmem:[#allocation5 + $0x18] sm:$0xff]
  %v1002 = vld [vmem:[#allocation5 + $0x20] sm:$0xff]
  %v1003 = vld [vmem:[#allocation5 + $0x28] sm:$0xff]
  %v1004 = vadd.f32 %v998, %v976
  %v1005 = vadd.f32 %v999, %v979
  %v1006 = vadd.f32 %v1000, %v984
  %v1007 = vadd.f32 %v1001, %v987
  %v1008 = vadd.f32 %v1002, %v992
  %v1009 = vadd.f32 %v1003, %v995
  %v1010 = vxor.u32 %v1004, 2147483648
  %v1011 = vxor.u32 %v1005, 2147483648
  %v1012 = vxor.u32 %v1006, 2147483648
  %v1013 = vxor.u32 %v1007, 2147483648
  %v1014 = vxor.u32 %v1008, 2147483648
  %v1015 = vxor.u32 %v1009, 2147483648
  %v1016 = vmul.f32 %v1010, 1.442695
  %v1017 = vpow.pop %v1016
  %v1018 = vmul.f32 %v1011, 1.442695
  %v1019 = vpow.pop %v1018
  %v1020 = vmul.f32 %v1012, 1.442695
  %v1021 = vpow.pop %v1020
  %v1022 = vmul.f32 %v1013, 1.442695
  %v1023 = vpow.pop %v1022
  %v1024 = vmul.f32 %v1014, 1.442695
  %v1025 = vpow.pop %v1024
  %v1026 = vmul.f32 %v1015, 1.442695
  %v1027 = vpow.pop %v1026
  %v1028 = vadd.f32 %v1017, 1.0
  %v1029 = vadd.f32 %v1019, 1.0
  %v1030 = vadd.f32 %v1021, 1.0
  %v1031 = vadd.f32 %v1023, 1.0
  %v1032 = vadd.f32 %v1025, 1.0
  %v1033 = vadd.f32 %v1027, 1.0
  %v1034 = vrcp.pop %v1028
  %v1035 = vmul.f32 1.0, %v1034
  %v1036 = vrcp.pop %v1029
  %v1037 = vmul.f32 1.0, %v1036
  %v1038 = vrcp.pop %v1030
  %v1039 = vmul.f32 1.0, %v1038
  %v1040 = vrcp.pop %v1031
  %v1041 = vmul.f32 1.0, %v1040
  %v1042 = vrcp.pop %v1032
  %v1043 = vmul.f32 1.0, %v1042
  %v1044 = vrcp.pop %v1033
  %v1045 = vmul.f32 1.0, %v1044
  %v1046 = vtanh.pop %v1004
  %v1047 = vtanh.pop %v1005
  %v1048 = vtanh.pop %v1006
  %v1049 = vtanh.pop %v1007
  %v1050 = vtanh.pop %v1008
  %v1051 = vtanh.pop %v1009
  %1058 = vrot.lane.b32.xlu0 %v914, 96
  %v1059 = vpop.permute.xlu0 %1058
  %1060 = vrot.lane.b32.xlu0 %v915, 96
  %v1061 = vpop.permute.xlu0 %1060
  %1062 = vrot.lane.b32.xlu0 %v916, 96
  %v1063 = vpop.permute.xlu0 %1062
  %1064 = vrot.lane.b32.xlu0 %v917, 96
  %v1065 = vpop.permute.xlu0 %1064
  %1066 = vrot.lane.b32.xlu0 %v918, 96
  %v1067 = vpop.permute.xlu0 %1066
  %1068 = vrot.lane.b32.xlu0 %v919, 96
  %v1069 = vpop.permute.xlu0 %1068
  %v1076 = vmul.f32 %v1035, %v1059
  %v1077 = vmul.f32 %v1037, %v1061
  %v1078 = vmul.f32 %v1039, %v1063
  %v1079 = vmul.f32 %v1041, %v1065
  %v1080 = vmul.f32 %v1043, %v1067
  %v1081 = vmul.f32 %v1045, %v1069
  %1088 = vrot.lane.b32.xlu0 %v1046, 32
  %v1089 = vpop.permute.xlu0 %1088
  %1090 = vrot.lane.b32.xlu0 %v1047, 32
  %v1091 = vpop.permute.xlu0 %1090
  %1092 = vrot.lane.b32.xlu0 %v1048, 32
  %v1093 = vpop.permute.xlu0 %1092
  %1094 = vrot.lane.b32.xlu0 %v1049, 32
  %v1095 = vpop.permute.xlu0 %1094
  %1096 = vrot.lane.b32.xlu0 %v1050, 32
  %v1097 = vpop.permute.xlu0 %1096
  %1098 = vrot.lane.b32.xlu0 %v1051, 32
  %v1099 = vpop.permute.xlu0 %1098
  %v1106 = vmul.f32 %v1035, %v1089
  %v1107 = vmul.f32 %v1037, %v1091
  %v1108 = vmul.f32 %v1039, %v1093
  %v1109 = vmul.f32 %v1041, %v1095
  %v1110 = vmul.f32 %v1043, %v1097
  %v1111 = vmul.f32 %v1045, %v1099
  %1118 = vrot.lane.b32.xlu0 %v1106, 32
  %v1119 = vpop.permute.xlu0 %1118
  %1120 = vrot.lane.b32.xlu0 %v1107, 32
  %v1121 = vpop.permute.xlu0 %1120
  %1122 = vrot.lane.b32.xlu0 %v1108, 32
  %v1123 = vpop.permute.xlu0 %1122
  %1124 = vrot.lane.b32.xlu0 %v1109, 32
  %v1125 = vpop.permute.xlu0 %1124
  %1126 = vrot.lane.b32.xlu0 %v1110, 32
  %v1127 = vpop.permute.xlu0 %1126
  %1128 = vrot.lane.b32.xlu0 %v1111, 32
  %v1129 = vpop.permute.xlu0 %1128
  %v1136 = vadd.f32 %v1076, %v1119
  %v1137 = vadd.f32 %v1077, %v1121
  %v1138 = vadd.f32 %v1078, %v1123
  %v1139 = vadd.f32 %v1079, %v1125
  %v1140 = vadd.f32 %v1080, %v1127
  %v1141 = vadd.f32 %v1081, %v1129
  %v1142 = vtanh.pop %v1136
  %v1143 = vtanh.pop %v1137
  %v1144 = vtanh.pop %v1138
  %v1145 = vtanh.pop %v1139
  %v1146 = vtanh.pop %v1140
  %v1147 = vtanh.pop %v1141
  %1154 = vrot.lane.b32.xlu0 %v1142, 32
  %v1155 = vpop.permute.xlu0 %1154
  %1156 = vrot.lane.b32.xlu0 %v1143, 32
  %v1157 = vpop.permute.xlu0 %1156
  %1158 = vrot.lane.b32.xlu0 %v1144, 32
  %v1159 = vpop.permute.xlu0 %1158
  %1160 = vrot.lane.b32.xlu0 %v1145, 32
  %v1161 = vpop.permute.xlu0 %1160
  %1162 = vrot.lane.b32.xlu0 %v1146, 32
  %v1163 = vpop.permute.xlu0 %1162
  %1164 = vrot.lane.b32.xlu0 %v1147, 32
  %v1165 = vpop.permute.xlu0 %1164
  %v1172 = vmul.f32 %v1035, %v1155
  %v1173 = vmul.f32 %v1037, %v1157
  %v1174 = vmul.f32 %v1039, %v1159
  %v1175 = vmul.f32 %v1041, %v1161
  %v1176 = vmul.f32 %v1043, %v1163
  %v1177 = vmul.f32 %v1045, %v1165
  %1184 = vrot.lane.b32.xlu0 %v1172, 96
  %v1185 = vpop.permute.xlu0 %1184
  %1186 = vrot.lane.b32.xlu0 %v1173, 96
  %v1187 = vpop.permute.xlu0 %1186
  %1188 = vrot.lane.b32.xlu0 %v1174, 96
  %v1189 = vpop.permute.xlu0 %1188
  %1190 = vrot.lane.b32.xlu0 %v1175, 96
  %v1191 = vpop.permute.xlu0 %1190
  %1192 = vrot.lane.b32.xlu0 %v1176, 96
  %v1193 = vpop.permute.xlu0 %1192
  %1194 = vrot.lane.b32.xlu0 %v1177, 96
  %v1195 = vpop.permute.xlu0 %1194
  %v1202 = vsel %vm304, %v914, %v1185
  %v1203 = vsel %vm304, %v915, %v1187
  %v1204 = vsel %vm304, %v916, %v1189
  %v1205 = vsel %vm304, %v917, %v1191
  %v1206 = vsel %vm304, %v918, %v1193
  %v1207 = vsel %vm304, %v919, %v1195
  %1208 = vrot.lane.b32.xlu0 %v1172, 64
  %v1209 = vpop.permute.xlu0 %1208
  %1210 = vrot.lane.b32.xlu0 %v1173, 64
  %v1211 = vpop.permute.xlu0 %1210
  %1212 = vrot.lane.b32.xlu0 %v1174, 64
  %v1213 = vpop.permute.xlu0 %1212
  %1214 = vrot.lane.b32.xlu0 %v1175, 64
  %v1215 = vpop.permute.xlu0 %1214
  %1216 = vrot.lane.b32.xlu0 %v1176, 64
  %v1217 = vpop.permute.xlu0 %1216
  %1218 = vrot.lane.b32.xlu0 %v1177, 64
  %v1219 = vpop.permute.xlu0 %1218
  %1226 = vrot.lane.b32.xlu0 %v914, 32
  %v1227 = vpop.permute.xlu0 %1226
  %1228 = vrot.lane.b32.xlu0 %v915, 32
  %v1229 = vpop.permute.xlu0 %1228
  %1230 = vrot.lane.b32.xlu0 %v916, 32
  %v1231 = vpop.permute.xlu0 %1230
  %1232 = vrot.lane.b32.xlu0 %v917, 32
  %v1233 = vpop.permute.xlu0 %1232
  %1234 = vrot.lane.b32.xlu0 %v918, 32
  %v1235 = vpop.permute.xlu0 %1234
  %1236 = vrot.lane.b32.xlu0 %v919, 32
  %v1237 = vpop.permute.xlu0 %1236
  %v1244 = vsel %vm304, %v1209, %v1227
  %v1245 = vsel %vm304, %v1211, %v1229
  %v1246 = vsel %vm304, %v1213, %v1231
  %v1247 = vsel %vm304, %v1215, %v1233
  %v1248 = vsel %vm304, %v1217, %v1235
  %v1249 = vsel %vm304, %v1219, %v1237
  %v1250 = vpack.c.bf16 %v1203, %v1202
  %v1251 = vpack.c.bf16 %v1205, %v1204
  %v1252 = vpack.c.bf16 %v1207, %v1206
  %v1253 = vpack.c.bf16 %v1245, %v1244
  %v1254 = vpack.c.bf16 %v1247, %v1246
  %v1255 = vpack.c.bf16 %v1249, %v1248
  %v1256 = vld [vmem:[%s5] sm:$0xf]
  %v1257 = vld [vmem:[%s5 + $0x4] sm:$0xf]
  %v1258 = vld [vmem:[%s5 + $0x8] sm:$0xf]
  %v1259 = vld [vmem:[%s5 + $0xc] sm:$0xf]
  %v1260 = vld [vmem:[%s5 + $0x10] sm:$0xf]
  %v1261 = vld [vmem:[%s5 + $0x14] sm:$0xf]
  %v1262 = vld [vmem:[%s5 + $0x18] sm:$0xf]
  %v1263 = vld [vmem:[%s5 + $0x1c] sm:$0xf]
  %v1264 = vld [vmem:[%s6] sm:$0x1]
  %v1266 = vlaneseq
  %v1267 = vshrl.u32 %v1266, 7
  %v1268 = vsub.s32 0, %v1267
  %v1269 = vrot.slane %v1264, %v1268
  %v1279 = vunpack.c.l.b16 %v1256
  %v1280 = vunpack.c.l.b16 %v1257
  %v1281 = vunpack.c.l.b16 %v1258
  %v1282 = vunpack.c.l.b16 %v1259
  %v1283 = vunpack.c.l.b16 %v1260
  %v1284 = vunpack.c.l.b16 %v1261
  %v1285 = vunpack.c.l.b16 %v1262
  %v1286 = vunpack.c.l.b16 %v1263
  %v1287 = vpack.c.b16 %v1280, %v1279
  %v1288 = vpack.c.b16 %v1282, %v1281
  %v1289 = vpack.c.b16 %v1284, %v1283
  %v1290 = vpack.c.b16 %v1286, %v1285
  %v1296 = vsel %vm394, %v1250, 0
  %v1299 = vsel %vm394, %v1251, 0
  %v1302 = vsel %vm394, %v1252, 0
  %v1305 = vsel %vm394, %v1253, 0
  %v1308 = vsel %vm394, %v1254, 0
  %v1311 = vsel %vm394, %v1255, 0
  %1313 = vmatprep.subr.bf16.mxu0 0
  %1314 = vmatpush1.bf16.msra.mxu0 %v1287
  %1315 = vmatprep.subr.bf16.mxu0 0
  %1316 = vmatpush1.bf16.msra.mxu0 %v1288
  %1317 = vmatprep.subr.bf16.mxu0 0
  %1318 = vmatpush1.bf16.msra.mxu0 %v1289
  %1319 = vmatprep.subr.bf16.mxu0 0
  %1320 = vmatpush1.bf16.msra.mxu0 %v1290
  %1321 = vmatprep.subr.bf16.mxu0 0
  %1322 = vmatpush1.bf16.msra.mxu0 0
  %1323 = vmatprep.subr.bf16.mxu0 0
  %1324 = vmatpush1.bf16.msra.mxu0 0
  %1325 = vmatprep.subr.bf16.mxu0 0
  %1326 = vmatpush1.bf16.msra.mxu0 0
  %1327 = vmatprep.subr.bf16.mxu0 0
  %1328 = vmatpush1.bf16.msra.mxu0 0
  %1329 = vmatprep.subr.bf16.mxu0 0
  %1330 = vmatpush1.bf16.msra.mxu0 0
  %1331 = vmatprep.subr.bf16.mxu0 0
  %1332 = vmatpush1.bf16.msra.mxu0 0
  %1333 = vmatprep.subr.bf16.mxu0 0
  %1334 = vmatpush1.bf16.msra.mxu0 0
  %1335 = vmatprep.subr.bf16.mxu0 0
  %1336 = vmatpush1.bf16.msra.mxu0 0
  %1337 = vmatprep.subr.bf16.mxu0 0
  %1338 = vmatpush1.bf16.msra.mxu0 0
  %1339 = vmatprep.subr.bf16.mxu0 0
  %1340 = vmatpush1.bf16.msra.mxu0 0
  %1341 = vmatprep.subr.bf16.mxu0 0
  %1342 = vmatpush1.bf16.msra.mxu0 0
  %1343 = vmatprep.subr.bf16.mxu0 0
  %1344 = vmatpush1.bf16.msra.mxu0 0
  %1345 = vmatprep.mubr.bf16.mxu0 0
  %1346 = vmatmul.mubr.bf16.gmra.mrb[0].mxu0 %v1296
  %v1347 = vpop.f32.mrb[0].mxu0
  %v1348 = vadd.f32 %v1269, %v1347
  %v1349 = vpop.f32.mrb[0].mxu0
  %v1350 = vpop.f32.mrb[0].mxu0
  %v1351 = vadd.f32 %v1269, %v1350
  %v1352 = vpop.f32.mrb[0].mxu0
  %1353 = vmatprep.mubr.bf16.mxu0 0
  %1354 = vmatmul.mubr.bf16.gmra.mrb[0].mxu0 %v1299
  %v1355 = vpop.f32.mrb[0].mxu0
  %v1356 = vadd.f32 %v1269, %v1355
  %v1357 = vpop.f32.mrb[0].mxu0
  %v1358 = vpop.f32.mrb[0].mxu0
  %v1359 = vadd.f32 %v1269, %v1358
  %v1360 = vpop.f32.mrb[0].mxu0
  %1361 = vmatprep.mubr.bf16.mxu0 0
  %1362 = vmatmul.mubr.bf16.gmra.mrb[0].mxu0 %v1302
  %v1363 = vpop.f32.mrb[0].mxu0
  %v1364 = vadd.f32 %v1269, %v1363
  %v1365 = vpop.f32.mrb[0].mxu0
  %v1366 = vpop.f32.mrb[0].mxu0
  %v1367 = vadd.f32 %v1269, %v1366
  %v1368 = vpop.f32.mrb[0].mxu0
  %1369 = vmatprep.mubr.bf16.mxu0 0
  %1370 = vmatmul.mubr.bf16.gmra.mrb[0].mxu0 %v1305
  %v1371 = vpop.f32.mrb[0].mxu0
  %v1372 = vadd.f32 %v1269, %v1371
  %v1373 = vpop.f32.mrb[0].mxu0
  %v1374 = vpop.f32.mrb[0].mxu0
  %v1375 = vadd.f32 %v1269, %v1374
  %v1376 = vpop.f32.mrb[0].mxu0
  %1377 = vmatprep.mubr.bf16.mxu0 0
  %1378 = vmatmul.mubr.bf16.gmra.mrb[0].mxu0 %v1308
  %v1379 = vpop.f32.mrb[0].mxu0
  %v1380 = vadd.f32 %v1269, %v1379
  %v1381 = vpop.f32.mrb[0].mxu0
  %v1382 = vpop.f32.mrb[0].mxu0
  %v1383 = vadd.f32 %v1269, %v1382
  %v1384 = vpop.f32.mrb[0].mxu0
  %1385 = vmatprep.mubr.bf16.mxu0 0
  %1386 = vmatmul.mubr.bf16.gmra.mrb[0].mxu0 %v1311
  %v1387 = vpop.f32.mrb[0].mxu0
  %v1388 = vadd.f32 %v1269, %v1387
  %v1389 = vpop.f32.mrb[0].mxu0
  %v1390 = vpop.f32.mrb[0].mxu0
  %v1391 = vadd.f32 %v1269, %v1390
  %v1392 = vpop.f32.mrb[0].mxu0
  %1393 = vdwg.mxu0
  %v1394 = vmax.f32 %v1348, 0.0
  %v1395 = vmax.f32 %v1351, 0.0
  %v1396 = vmax.f32 %v1356, 0.0
  %v1397 = vmax.f32 %v1359, 0.0
  %v1398 = vmax.f32 %v1364, 0.0
  %v1399 = vmax.f32 %v1367, 0.0
  %v1400 = vmax.f32 %v1372, 0.0
  %v1401 = vmax.f32 %v1375, 0.0
  %v1402 = vmax.f32 %v1380, 0.0
  %v1403 = vmax.f32 %v1383, 0.0
  %v1404 = vmax.f32 %v1388, 0.0
  %v1405 = vmax.f32 %v1391, 0.0
  %v1406 = vpack.c.bf16 %v1395, %v1394
  %v1407 = vpack.c.bf16 %v1397, %v1396
  %v1408 = vpack.c.bf16 %v1399, %v1398
  %v1409 = vpack.c.bf16 %v1401, %v1400
  %v1410 = vpack.c.bf16 %v1403, %v1402
  %v1411 = vpack.c.bf16 %v1405, %v1404
  %v1412 = vld [vmem:[%s7] sm:$0xf]
  %v1413 = vld [vmem:[%s7 + $0x4] sm:$0xf]
  %v1414 = vld [vmem:[%s7 + $0x8] sm:$0xf]
  %v1415 = vld [vmem:[%s7 + $0xc] sm:$0xf]
  %v1416 = vld [vmem:[%s7 + $0x10] sm:$0xf]
  %v1417 = vld [vmem:[%s7 + $0x14] sm:$0xf]
  %v1418 = vld [vmem:[%s7 + $0x18] sm:$0xf]
  %v1419 = vld [vmem:[%s7 + $0x1c] sm:$0xf]
  %v1420 = vld [vmem:[%s7 + $0x20] sm:$0xf]
  %v1421 = vld [vmem:[%s7 + $0x24] sm:$0xf]
  %v1422 = vld [vmem:[%s7 + $0x28] sm:$0xf]
  %v1423 = vld [vmem:[%s7 + $0x2c] sm:$0xf]
  %v1424 = vld [vmem:[%s7 + $0x30] sm:$0xf]
  %v1425 = vld [vmem:[%s7 + $0x34] sm:$0xf]
  %v1426 = vld [vmem:[%s7 + $0x38] sm:$0xf]
  %v1427 = vld [vmem:[%s7 + $0x3c] sm:$0xf]
  %v1428 = vld [vmem:[%s8] sm:$0x1]
  %v1430 = vlaneseq
  %v1431 = vshrl.u32 %v1430, 7
  %v1432 = vsub.s32 0, %v1431
  %v1433 = vrot.slane %v1428, %v1432
  %v1451 = vunpack.c.l.b16 %v1412
  %v1452 = vunpack.c.l.b16 %v1413
  %v1453 = vunpack.c.l.b16 %v1414
  %v1454 = vunpack.c.l.b16 %v1415
  %v1455 = vunpack.c.l.b16 %v1416
  %v1456 = vunpack.c.l.b16 %v1417
  %v1457 = vunpack.c.l.b16 %v1418
  %v1458 = vunpack.c.l.b16 %v1419
  %v1459 = vunpack.c.l.b16 %v1420
  %v1460 = vunpack.c.l.b16 %v1421
  %v1461 = vunpack.c.l.b16 %v1422
  %v1462 = vunpack.c.l.b16 %v1423
  %v1463 = vunpack.c.l.b16 %v1424
  %v1464 = vunpack.c.l.b16 %v1425
  %v1465 = vunpack.c.l.b16 %v1426
  %v1466 = vunpack.c.l.b16 %v1427
  %v1467 = vpack.c.b16 %v1452, %v1451
  %v1468 = vpack.c.b16 %v1454, %v1453
  %v1469 = vpack.c.b16 %v1456, %v1455
  %v1470 = vpack.c.b16 %v1458, %v1457
  %v1471 = vpack.c.b16 %v1460, %v1459
  %v1472 = vpack.c.b16 %v1462, %v1461
  %v1473 = vpack.c.b16 %v1464, %v1463
  %v1474 = vpack.c.b16 %v1466, %v1465
  %1483 = vmatprep.subr.bf16.mxu0 0
  %1484 = vmatpush1.bf16.msra.mxu0 %v1467
  %1485 = vmatprep.subr.bf16.mxu0 0
  %1486 = vmatpush1.bf16.msra.mxu0 %v1468
  %1487 = vmatprep.subr.bf16.mxu0 0
  %1488 = vmatpush1.bf16.msra.mxu0 %v1469
  %1489 = vmatprep.subr.bf16.mxu0 0
  %1490 = vmatpush1.bf16.msra.mxu0 %v1470
  %1491 = vmatprep.subr.bf16.mxu0 0
  %1492 = vmatpush1.bf16.msra.mxu0 %v1471
  %1493 = vmatprep.subr.bf16.mxu0 0
  %1494 = vmatpush1.bf16.msra.mxu0 %v1472
  %1495 = vmatprep.subr.bf16.mxu0 0
  %1496 = vmatpush1.bf16.msra.mxu0 %v1473
  %1497 = vmatprep.subr.bf16.mxu0 0
  %1498 = vmatpush1.bf16.msra.mxu0 %v1474
  %1499 = vmatprep.subr.bf16.mxu0 0
  %1500 = vmatpush1.bf16.msra.mxu0 0
  %1501 = vmatprep.subr.bf16.mxu0 0
  %1502 = vmatpush1.bf16.msra.mxu0 0
  %1503 = vmatprep.subr.bf16.mxu0 0
  %1504 = vmatpush1.bf16.msra.mxu0 0
  %1505 = vmatprep.subr.bf16.mxu0 0
  %1506 = vmatpush1.bf16.msra.mxu0 0
  %1507 = vmatprep.subr.bf16.mxu0 0
  %1508 = vmatpush1.bf16.msra.mxu0 0
  %1509 = vmatprep.subr.bf16.mxu0 0
  %1510 = vmatpush1.bf16.msra.mxu0 0
  %1511 = vmatprep.subr.bf16.mxu0 0
  %1512 = vmatpush1.bf16.msra.mxu0 0
  %1513 = vmatprep.subr.bf16.mxu0 0
  %1514 = vmatpush1.bf16.msra.mxu0 0
  %1515 = vmatprep.mubr.bf16.mxu0 0
  %1516 = vmatmul.mubr.bf16.gmra.mrb[0].mxu0 %v1406
  %v1517 = vpop.f32.mrb[0].mxu0
  %v1518 = vadd.f32 %v1433, %v1517
  %v1519 = vpop.f32.mrb[0].mxu0
  %v1520 = vpop.f32.mrb[0].mxu0
  %v1521 = vadd.f32 %v1433, %v1520
  %v1522 = vpop.f32.mrb[0].mxu0
  %1523 = vmatprep.mubr.bf16.mxu0 0
  %1524 = vmatmul.mubr.bf16.gmra.mrb[0].mxu0 %v1407
  %v1525 = vpop.f32.mrb[0].mxu0
  %v1526 = vadd.f32 %v1433, %v1525
  %v1527 = vpop.f32.mrb[0].mxu0
  %v1528 = vpop.f32.mrb[0].mxu0
  %v1529 = vadd.f32 %v1433, %v1528
  %v1530 = vpop.f32.mrb[0].mxu0
  %1531 = vmatprep.mubr.bf16.mxu0 0
  %1532 = vmatmul.mubr.bf16.gmra.mrb[0].mxu0 %v1408
  %v1533 = vpop.f32.mrb[0].mxu0
  %v1534 = vadd.f32 %v1433, %v1533
  %v1535 = vpop.f32.mrb[0].mxu0
  %v1536 = vpop.f32.mrb[0].mxu0
  %v1537 = vadd.f32 %v1433, %v1536
  %v1538 = vpop.f32.mrb[0].mxu0
  %1539 = vmatprep.mubr.bf16.mxu0 0
  %1540 = vmatmul.mubr.bf16.gmra.mrb[0].mxu0 %v1409
  %v1541 = vpop.f32.mrb[0].mxu0
  %v1542 = vadd.f32 %v1433, %v1541
  %v1543 = vpop.f32.mrb[0].mxu0
  %v1544 = vpop.f32.mrb[0].mxu0
  %v1545 = vadd.f32 %v1433, %v1544
  %v1546 = vpop.f32.mrb[0].mxu0
  %1547 = vmatprep.mubr.bf16.mxu0 0
  %1548 = vmatmul.mubr.bf16.gmra.mrb[0].mxu0 %v1410
  %v1549 = vpop.f32.mrb[0].mxu0
  %v1550 = vadd.f32 %v1433, %v1549
  %v1551 = vpop.f32.mrb[0].mxu0
  %v1552 = vpop.f32.mrb[0].mxu0
  %v1553 = vadd.f32 %v1433, %v1552
  %v1554 = vpop.f32.mrb[0].mxu0
  %1555 = vmatprep.mubr.bf16.mxu0 0
  %1556 = vmatmul.mubr.bf16.gmra.mrb[0].mxu0 %v1411
  %v1557 = vpop.f32.mrb[0].mxu0
  %v1558 = vadd.f32 %v1433, %v1557
  %v1559 = vpop.f32.mrb[0].mxu0
  %v1560 = vpop.f32.mrb[0].mxu0
  %v1561 = vadd.f32 %v1433, %v1560
  %v1562 = vpop.f32.mrb[0].mxu0
  %1563 = vdwg.mxu0
  %1570 = vrot.lane.b32.xlu0 %v1542, 64
  %v1571 = vpop.permute.xlu0 %1570
  %1572 = vrot.lane.b32.xlu0 %v1545, 64
  %v1573 = vpop.permute.xlu0 %1572
  %1574 = vrot.lane.b32.xlu0 %v1550, 64
  %v1575 = vpop.permute.xlu0 %1574
  %1576 = vrot.lane.b32.xlu0 %v1553, 64
  %v1577 = vpop.permute.xlu0 %1576
  %1578 = vrot.lane.b32.xlu0 %v1558, 64
  %v1579 = vpop.permute.xlu0 %1578
  %1580 = vrot.lane.b32.xlu0 %v1561, 64
  %v1581 = vpop.permute.xlu0 %1580
  %v1588 = vsel %vm394, %v1518, %v1571
  %v1589 = vsel %vm394, %v1521, %v1573
  %v1590 = vsel %vm394, %v1526, %v1575
  %v1591 = vsel %vm394, %v1529, %v1577
  %v1592 = vsel %vm394, %v1534, %v1579
  %v1593 = vsel %vm394, %v1537, %v1581
  %1594 = vst [vmem:[%s9] sm:$0xff] %v1588
  %1595 = vst [vmem:[%s9 + $0x8] sm:$0xff] %v1589
  %1596 = vst [vmem:[%s9 + $0x10] sm:$0xff] %v1590
  %1597 = vst [vmem:[%s9 + $0x18] sm:$0xff] %v1591
  %1598 = vst [vmem:[%s9 + $0x20] sm:$0xff] %v1592
  %1599 = vst [vmem:[%s9 + $0x28] sm:$0xff] %v1593
  // Predicated region
  $region42: #{frame_correlation_predict.1} parent=0 // pred_check
    _
  $region43: #{frame_correlation_predict.1} parent=0 // pred_check_branch
    %1601 = sbr.rel (0) target = $region45
  $region44: #{frame_correlation_predict.1} parent=0 // pred_region
    _
  $region45: #{frame_correlation_predict.1} parent=0 // pred_fallthru
    _
  // Predicated region
  $region46: #{frame_correlation_predict.1} parent=0 // pred_check
    _
  $region47: #{frame_correlation_predict.1} parent=0 // pred_check_branch
    %1603 = sbr.rel (0) target = $region49
  $region48: #{frame_correlation_predict.1} parent=0 // pred_region
    _
  $region49: #{frame_correlation_predict.1} parent=0 // pred_fallthru
    _

</llo_original>
